<compile_context>
chip_gen: v7x
topology: tpu7x:2x2x1
jax: 0.10.0
libtpu: 0.0.40
codegen_flags: <defaults>
</compile_context>

<pallas_src>
import functools
import math

import jax
import jax.numpy as jnp
from jax.experimental import pallas as pl
from jax.experimental.pallas import tpu as pltpu

LN_EPS = 1e-5  # LayerNorm over the channel dim (glow-tts style LayerNorm)


def _round_up(x, m):
    return (x + m - 1) // m * m


def _vmem_capacity_bytes():
    try:
        info = pltpu.get_tpu_info()
        cap = getattr(info, "vmem_capacity_bytes", None)
        if cap:
            return int(cap)
    except Exception:
        pass
    return 64 << 20  # conservative default (v7x-sized)


# ----------------------------------------------------------------------------
# Fused Pallas kernel: n_layers x (mask -> conv -> LN -> ReLU) + proj + residual
# ----------------------------------------------------------------------------
def _fused_conv_relu_norm_kernel(
        x_pad_ref,   # (1, Cin, Tpad)      zero-padded input row (halo + core pad)
        m_pad_ref,   # (1, 1,  Tpad)       zero-padded mask row
        w0_ref,      # (H, K*Cin)          layer-0 folded conv weight
        wr_ref,      # (L-1, H, K*H)       folded conv weights, layers 1..L-1
        cb_ref,      # (L, H, 1)           conv biases
        g_ref,       # (L, H, 1)           LayerNorm gammas
        bt_ref,      # (L, H, 1)           LayerNorm betas
        wp_ref,      # (Cout, H)           1x1 projection weight
        bp_ref,      # (Cout, 1)           1x1 projection bias
        o_ref,       # (1, Cout, tile_t)
        *, n_layers, K, pad, tile_t, halo, num_tiles, c_in, hidden,
        compute_dtype, fold_align):
    w0_width = tile_t + 2 * halo  # layer-0 input window width for this tile

    # ---- one trimmed window load per input (single copy, cast is no-op f32) --
    if num_tiles == 1:
        xw = x_pad_ref[0]                                   # (Cin, Tpad == w0_width)
        mw = m_pad_ref[0]                                   # (1,   Tpad)
    else:
        # tile_t is a multiple of 128 -> lane-aligned dynamic window start.
        start = pl.multiple_of(pl.program_id(1) * tile_t, 128)
        xw = x_pad_ref[0, :, pl.ds(start, w0_width)]
        mw = m_pad_ref[0, :, pl.ds(start, w0_width)]
    xw = xw.astype(jnp.float32)                             # (Cin, W0)
    mw = mw.astype(jnp.float32)                             # (1,   W0)

    xm0 = xw * mw                      # masked & zero-padded layer-0 conv input
    res = xm0[:, halo:halo + tile_t]   # == x_org * x_mask on the output tile
    m_c = mw[:, halo:halo + tile_t]    # mask on the output tile

    h = xm0
    w_cur = w0_width
    for l in range(n_layers):
        w_out = w_cur - 2 * pad
        cin_l = c_in if l == 0 else hidden
        # Mask before every conv; mw == 0 outside [0, T) also reproduces the
        # Conv1d zero padding at the sequence boundary and at tile halos.
        hm = h if l == 0 else h * mw[:, l * pad:l * pad + w_cur]
        hm = hm.astype(compute_dtype)                       # one MXU-feed cast / layer
        wl = w0_ref[...] if l == 0 else wr_ref[l - 1]       # (H, K*cin_l)

        if cin_l % fold_align == 0:
            # Fold all K taps into ONE MXU contraction of size K*cin_l:
            # im2col slab (K*cin_l, w_out) via aligned sublane concat.
            slab = jnp.concatenate([hm[:, d:d + w_out] for d in range(K)], axis=0)
            acc = jnp.dot(wl, slab, preferred_element_type=jnp.float32)
        else:
            # Fallback (only tiny, non-sublane-aligned layer-0 channel counts).
            acc = jnp.dot(wl[:, :cin_l], hm[:, 0:w_out],
                          preferred_element_type=jnp.float32)
            for d in range(1, K):
                acc = acc + jnp.dot(wl[:, d * cin_l:(d + 1) * cin_l],
                                    hm[:, d:d + w_out],
                                    preferred_element_type=jnp.float32)
        acc = acc + cb_ref[l]                                # (H, w_out)

        # LayerNorm over channels (sublane axis) -- two-pass centered variance.
        mu = jnp.mean(acc, axis=0, keepdims=True)            # (1, w_out)
        xc = acc - mu
        var = jnp.mean(xc * xc, axis=0, keepdims=True)
        y = xc * jax.lax.rsqrt(var + LN_EPS) * g_ref[l] + bt_ref[l]
        # ReLU (+ Dropout: identity at inference)
        # TODO(synk): training-mode dropout (p_dropout) not implemented; eval semantics.
        h = jnp.maximum(y, 0.0)
        w_cur = w_out

    # ---- 1x1 projection + residual + final mask (all lane-dense) ------------
    yp = jnp.dot(wp_ref[...], h.astype(compute_dtype),
                 preferred_element_type=jnp.float32) + bp_ref[...]
    # (x_org + proj(h)) * mask  ==  x_org*mask + proj(h)*mask
    o_ref[0] = (res + yp * m_c).astype(o_ref.dtype)


# ----------------------------------------------------------------------------
# Wrapper: weight folding, padding, time tiling, BlockSpecs
# ----------------------------------------------------------------------------
def conv_relu_norm_forward(x_nct, x_mask_n1t, params, *,
                           tile_t_target=1024, mxu_dtype=jnp.bfloat16):
    """ConvReluNorm forward.  x_nct: (B, Cin, T), x_mask_n1t: (B, 1, T) -> (B, Cout, T)."""
    B, c_in, T = x_nct.shape
    w0 = params["w0"]            # (K, H, Cin)
    wr = params["w_rest"]        # (n_layers-1, K, H, H)
    cb = params["conv_b"]        # (n_layers, H, 1)
    g = params["ln_g"]           # (n_layers, H, 1)
    bt = params["ln_b"]          # (n_layers, H, 1)
    wp = params["proj_w"]        # (Cout, H)
    bp = params["proj_b"]        # (Cout, 1)

    K, hidden, _ = w0.shape
    n_layers = 1 + wr.shape[0]
    c_out = wp.shape[0]
    assert n_layers > 1, "Number of layers should be larger than 1."
    assert c_out == c_in, "residual add requires out_channels == in_channels"
    # TODO(synk): even kernel_size (PyTorch emits T+1 frames with padding=K//2) not supported.
    assert K % 2 == 1, "only odd kernel_size is supported"
    pad = K // 2
    halo = n_layers * pad        # per-tile recompute halo across the fused stack

    compute_dtype = jnp.dtype(mxu_dtype) if mxu_dtype is not None else jnp.dtype(jnp.float32)
    fold_align = 16 if compute_dtype.itemsize == 2 else 8   # sublane-tile alignment

    # --- fold the K conv taps into (H, K*Cin_l) matrices; cast MXU feeds once -
    w0_flat = jnp.transpose(w0, (1, 0, 2)).reshape(hidden, K * c_in).astype(compute_dtype)
    wr_flat = jnp.transpose(wr, (0, 2, 1, 3)).reshape(
        n_layers - 1, hidden, K * hidden).astype(compute_dtype)
    wp_c = wp.astype(compute_dtype)

    # --- time tiling (lane axis): big lane-dense tiles, bounded VMEM ---------
    if T > tile_t_target:
        tile_t = _round_up(tile_t_target, 128)
    else:
        tile_t = _round_up(T, 128)          # lane-dense output stores
    num_tiles = pl.cdiv(T, tile_t)
    if B == 1 and num_tiles == 1 and T > 128:
        # keep both v7x TensorCores busy for a single short sequence
        tile_t = _round_up(pl.cdiv(T, 2), 128)
        num_tiles = pl.cdiv(T, tile_t)
    w0_width = tile_t + 2 * halo
    t_core = num_tiles * tile_t
    t_pad = (num_tiles - 1) * tile_t + w0_width   # == t_core + 2*halo

    # Pad x / mask ONCE (zeros outside [0, T) double as Conv1d boundary padding).
    mask = x_mask_n1t.astype(x_nct.dtype)
    x_pad = jnp.pad(x_nct, ((0, 0), (0, 0), (halo, t_pad - T - halo)))
    m_pad = jnp.pad(mask, ((0, 0), (0, 0), (halo, t_pad - T - halo)))

    # Explicit, generation-aware VMEM budget from the chosen tile sizes.
    bpf_w = compute_dtype.itemsize
    in_bpf = jnp.dtype(x_nct.dtype).itemsize
    w_bytes = int((w0_flat.size + wr_flat.size + wp_c.size) * bpf_w
                  + (cb.size + g.size + bt.size + bp.size) * 4)
    row_bytes = (c_in + 1) * t_pad * in_bpf                  # Buffered(1): single copy
    out_bytes = 2 * c_out * tile_t * in_bpf                  # double-buffered output
    big_c = max(c_in, hidden)
    tmp_bytes = (K * big_c * w0_width * bpf_w                # im2col slab (MXU feed)
                 + 6 * big_c * w0_width * 4                  # live f32 slabs (acc/xc/y/h/hm)
                 + 2 * (c_in + 1) * w0_width * 4)            # windowed x / mask copies
    need = w_bytes + row_bytes + out_bytes + tmp_bytes + (4 << 20)
    cap = _vmem_capacity_bytes()
    head = (40 << 20) if cap <= (64 << 20) else (100 << 20)  # v7x vs v5e/v6e clamp
    vmem_limit = int(min(max(need, 16 << 20), head))

    kernel = functools.partial(
        _fused_conv_relu_norm_kernel,
        n_layers=n_layers, K=K, pad=pad, tile_t=tile_t, halo=halo,
        num_tiles=num_tiles, c_in=c_in, hidden=hidden,
        compute_dtype=compute_dtype, fold_align=fold_align)

    inv = pl.Buffered(1)   # grid-invariant / row-resident blocks: no double-buffering

    out = pl.pallas_call(
        kernel,
        out_shape=jax.ShapeDtypeStruct((B, c_out, t_core), x_nct.dtype),
        grid=(B, num_tiles),
        in_specs=[
            pl.BlockSpec((1, c_in, t_pad), lambda b, t: (b, 0, 0), pipeline_mode=inv),
            pl.BlockSpec((1, 1, t_pad), lambda b, t: (b, 0, 0), pipeline_mode=inv),
            pl.BlockSpec(w0_flat.shape, lambda b, t: (0, 0), pipeline_mode=inv),
            pl.BlockSpec(wr_flat.shape, lambda b, t: (0, 0, 0), pipeline_mode=inv),
            pl.BlockSpec(cb.shape, lambda b, t: (0, 0, 0), pipeline_mode=inv),
            pl.BlockSpec(g.shape, lambda b, t: (0, 0, 0), pipeline_mode=inv),
            pl.BlockSpec(bt.shape, lambda b, t: (0, 0, 0), pipeline_mode=inv),
            pl.BlockSpec(wp_c.shape, lambda b, t: (0, 0), pipeline_mode=inv),
            pl.BlockSpec(bp.shape, lambda b, t: (0, 0), pipeline_mode=inv),
        ],
        out_specs=pl.BlockSpec((1, c_out, tile_t), lambda b, t: (b, 0, t)),
        compiler_params=pltpu.CompilerParams(
            dimension_semantics=("parallel", "parallel"),
            vmem_limit_bytes=vmem_limit),
    )(x_pad, m_pad, w0_flat, wr_flat, cb, g, bt, wp_c, bp)

    return out[:, :, :T]


# ----------------------------------------------------------------------------
# Deterministic parameter init (shapes from ConvReluNorm.__init__)
# ----------------------------------------------------------------------------
def init_params(key, in_channels, hidden_channels, out_channels,
                kernel_size, n_layers, zero_proj=True):
    assert n_layers > 1
    ws, bs = [], []
    cin = in_channels
    for _ in range(n_layers):
        key, kw, kb = jax.random.split(key, 3)
        bound = 1.0 / math.sqrt(cin * kernel_size)
        # stored as (K, Cout, Cin) -- channels-first friendly layout
        ws.append(jax.random.uniform(kw, (kernel_size, hidden_channels, cin),
                                     jnp.float32, -bound, bound))
        bs.append(jax.random.uniform(kb, (hidden_channels, 1),
                                     jnp.float32, -bound, bound))
        cin = hidden_channels
    params = {
        "w0": ws[0],
        "w_rest": jnp.stack(ws[1:], axis=0),
        "conv_b": jnp.stack(bs, axis=0),
        "ln_g": jnp.ones((n_layers, hidden_channels, 1), jnp.float32),
        "ln_b": jnp.zeros((n_layers, hidden_channels, 1), jnp.float32),
    }
    if zero_proj:  # matches the PyTorch module (proj is zero-initialised)
        params["proj_w"] = jnp.zeros((out_channels, hidden_channels), jnp.float32)
        params["proj_b"] = jnp.zeros((out_channels, 1), jnp.float32)
    else:
        key, kw, kb = jax.random.split(key, 3)
        bound = 1.0 / math.sqrt(hidden_channels)
        params["proj_w"] = jax.random.uniform(kw, (out_channels, hidden_channels),
                                              jnp.float32, -bound, bound)
        params["proj_b"] = jax.random.uniform(kb, (out_channels, 1),
                                              jnp.float32, -bound, bound)
    return params


# ----------------------------------------------------------------------------
# Pure-JAX reference (mirrors the PyTorch module, eval mode)
# ----------------------------------------------------------------------------
def conv_relu_norm_reference(x, x_mask, params):
    T = x.shape[-1]
    w0, wr = params["w0"], params["w_rest"]
    n_layers = 1 + wr.shape[0]
    K = w0.shape[0]
    pad = K // 2
    h = x
    for l in range(n_layers):
        w = w0 if l == 0 else wr[l - 1]                           # (K, H, Cin_l)
        hp = jnp.pad(h * x_mask, ((0, 0), (0, 0), (pad, pad)))
        conv = sum(jnp.einsum("oc,bct->bot", w[d], hp[:, :, d:d + T])
                   for d in range(K))
        conv = conv + params["conv_b"][l][None]
        mean = jnp.mean(conv, axis=1, keepdims=True)
        var = jnp.mean((conv - mean) ** 2, axis=1, keepdims=True)
        y = (conv - mean) * jax.lax.rsqrt(var + LN_EPS)
        y = y * params["ln_g"][l][None] + params["ln_b"][l][None]
        h = jnp.maximum(y, 0.0)
    proj = jnp.einsum("oh,bht->bot", params["proj_w"], h) + params["proj_b"][None]
    return (x + proj) * x_mask


if __name__ == "__main__":
    B, C_IN, HIDDEN, C_OUT, K, N_LAYERS, T = 2, 4, 32, 4, 3, 3, 16

    key = jax.random.PRNGKey(0)
    key, kx = jax.random.split(key)
    x = jax.random.normal(kx, (B, C_IN, T), jnp.float32)
    lengths = jnp.array([T, T - 5])
    x_mask = (jnp.arange(T)[None, None, :] < lengths[:, None, None]).astype(jnp.float32)

    # Non-zero projection so the check below is not trivially `x * x_mask`
    # (the PyTorch module zero-inits proj; pass zero_proj=True for that behaviour).
    params = init_params(key, C_IN, HIDDEN, C_OUT, K, N_LAYERS, zero_proj=False)
    ref = conv_relu_norm_reference(x, x_mask, params)

    # 1) f32 MXU-feed path: tight structural check against the reference.
    out_f32 = jax.jit(functools.partial(conv_relu_norm_forward, mxu_dtype=None))(
        x, x_mask, params)
    jax.block_until_ready(out_f32)
    assert out_f32.shape == (B, C_OUT, T), out_f32.shape
    err_f32 = float(jnp.max(jnp.abs(out_f32 - ref)))
    assert err_f32 < 5e-2, f"f32-path kernel/reference mismatch: max abs err = {err_f32}"

    # 2) Default (bf16 MXU feed) path: looser tolerance for bf16 matmul rounding.
    out = jax.jit(conv_relu_norm_forward)(x, x_mask, params)
    jax.block_until_ready(out)
    assert out.shape == (B, C_OUT, T), out.shape
    err_bf16 = float(jnp.max(jnp.abs(out - ref)))
    assert err_bf16 < 2e-1, f"bf16-path kernel/reference mismatch: max abs err = {err_bf16}"

    print("KERNEL_OK")
</pallas_src>

<mosaic_0001>
module attributes {stable_mosaic.version = 11 : i64} {
  func.func @_fused_conv_relu_norm_kernel(%arg0: i32, %arg1: i32, %arg2: memref<1x4x134xf32, #tpu.memory_space<vmem>>, %arg3: memref<1x1x134xf32, #tpu.memory_space<vmem>>, %arg4: memref<32x12xf32, #tpu.memory_space<vmem>>, %arg5: memref<2x32x96xf32, #tpu.memory_space<vmem>>, %arg6: memref<3x32x1xf32, #tpu.memory_space<vmem>>, %arg7: memref<3x32x1xf32, #tpu.memory_space<vmem>>, %arg8: memref<3x32x1xf32, #tpu.memory_space<vmem>>, %arg9: memref<4x32xf32, #tpu.memory_space<vmem>>, %arg10: memref<4x1xf32, #tpu.memory_space<vmem>>, %arg11: memref<1x4x128xf32, #tpu.memory_space<vmem>>) attributes {dimension_semantics = [#tpu.dimension_semantics<parallel>, #tpu.dimension_semantics<parallel>], iteration_bounds = array<i64: 2, 1>, scalar_prefetch = 0 : i64, scratch_operands = 0 : i64, tpu.core_type = #tpu.core_type<tc>, window_params = [{pipeline_mode = #tpu.pipeline_mode<synchronous>, transform_indices = @transform_0, window_bounds = array<i64: 1, 4, 134>}, {pipeline_mode = #tpu.pipeline_mode<synchronous>, transform_indices = @transform_1, window_bounds = array<i64: 1, 1, 134>}, {pipeline_mode = #tpu.pipeline_mode<synchronous>, transform_indices = @transform_2, window_bounds = array<i64: 32, 12>}, {pipeline_mode = #tpu.pipeline_mode<synchronous>, transform_indices = @transform_3, window_bounds = array<i64: 2, 32, 96>}, {pipeline_mode = #tpu.pipeline_mode<synchronous>, transform_indices = @transform_4, window_bounds = array<i64: 3, 32, 1>}, {pipeline_mode = #tpu.pipeline_mode<synchronous>, transform_indices = @transform_5, window_bounds = array<i64: 3, 32, 1>}, {pipeline_mode = #tpu.pipeline_mode<synchronous>, transform_indices = @transform_6, window_bounds = array<i64: 3, 32, 1>}, {pipeline_mode = #tpu.pipeline_mode<synchronous>, transform_indices = @transform_7, window_bounds = array<i64: 4, 32>}, {pipeline_mode = #tpu.pipeline_mode<synchronous>, transform_indices = @transform_8, window_bounds = array<i64: 4, 1>}, {transform_indices = @transform_9, window_bounds = array<i64: 1, 4, 128>}]} {
    %c0 = arith.constant 0 : index
    %c0_0 = arith.constant 0 : index
    %c0_1 = arith.constant 0 : index
    %0 = vector.load %arg2[%c0, %c0_0, %c0_1] : memref<1x4x134xf32, #tpu.memory_space<vmem>>, vector<1x4x134xf32>
    %1 = vector.shape_cast %0 : vector<1x4x134xf32> to vector<4x134xf32>
    %c0_2 = arith.constant 0 : index
    %c0_3 = arith.constant 0 : index
    %c0_4 = arith.constant 0 : index
    %2 = vector.load %arg3[%c0_2, %c0_3, %c0_4] : memref<1x1x134xf32, #tpu.memory_space<vmem>>, vector<1x1x134xf32>
    %3 = vector.shape_cast %2 : vector<1x1x134xf32> to vector<1x134xf32>
    %4 = vector.broadcast %3 : vector<1x134xf32> to vector<4x134xf32>
    %5 = arith.mulf %1, %4 : vector<4x134xf32>
    %6 = vector.extract_strided_slice %5 {offsets = [0, 3], sizes = [4, 128], strides = [1, 1]} : vector<4x134xf32> to vector<4x128xf32>
    %7 = vector.extract_strided_slice %3 {offsets = [0, 3], sizes = [1, 128], strides = [1, 1]} : vector<1x134xf32> to vector<1x128xf32>
    %c0_5 = arith.constant 0 : index
    %c0_6 = arith.constant 0 : index
    %8 = vector.load %arg4[%c0_5, %c0_6] : memref<32x12xf32, #tpu.memory_space<vmem>>, vector<32x12xf32>
    %9 = vector.extract_strided_slice %8 {offsets = [0, 0], sizes = [32, 4], strides = [1, 1]} : vector<32x12xf32> to vector<32x4xf32>
    %10 = vector.extract_strided_slice %5 {offsets = [0, 0], sizes = [4, 132], strides = [1, 1]} : vector<4x134xf32> to vector<4x132xf32>
    %cst = arith.constant dense<0.000000e+00> : vector<32x132xf32>
    %11 = tpu.matmul %9, %10, %cst {dimension_numbers = #tpu.dot_dimension_numbers<[1], [0], [0], [1], [0, 0, 1, 1], [], []>} : vector<32x4xf32>, vector<4x132xf32>, vector<32x132xf32> -> vector<32x132xf32>
    %12 = vector.extract_strided_slice %8 {offsets = [0, 4], sizes = [32, 4], strides = [1, 1]} : vector<32x12xf32> to vector<32x4xf32>
    %13 = vector.extract_strided_slice %5 {offsets = [0, 1], sizes = [4, 132], strides = [1, 1]} : vector<4x134xf32> to vector<4x132xf32>
    %cst_7 = arith.constant dense<0.000000e+00> : vector<32x132xf32>
    %14 = tpu.matmul %12, %13, %cst_7 {dimension_numbers = #tpu.dot_dimension_numbers<[1], [0], [0], [1], [0, 0, 1, 1], [], []>} : vector<32x4xf32>, vector<4x132xf32>, vector<32x132xf32> -> vector<32x132xf32>
    %15 = arith.addf %11, %14 : vector<32x132xf32>
    %16 = vector.extract_strided_slice %8 {offsets = [0, 8], sizes = [32, 4], strides = [1, 1]} : vector<32x12xf32> to vector<32x4xf32>
    %17 = vector.extract_strided_slice %5 {offsets = [0, 2], sizes = [4, 132], strides = [1, 1]} : vector<4x134xf32> to vector<4x132xf32>
    %cst_8 = arith.constant dense<0.000000e+00> : vector<32x132xf32>
    %18 = tpu.matmul %16, %17, %cst_8 {dimension_numbers = #tpu.dot_dimension_numbers<[1], [0], [0], [1], [0, 0, 1, 1], [], []>} : vector<32x4xf32>, vector<4x132xf32>, vector<32x132xf32> -> vector<32x132xf32>
    %19 = arith.addf %15, %18 : vector<32x132xf32>
    %c0_9 = arith.constant 0 : index
    %c0_10 = arith.constant 0 : index
    %c0_11 = arith.constant 0 : index
    %20 = vector.load %arg6[%c0_9, %c0_10, %c0_11] : memref<3x32x1xf32, #tpu.memory_space<vmem>>, vector<1x32x1xf32>
    %21 = vector.shape_cast %20 : vector<1x32x1xf32> to vector<32x1xf32>
    %22 = vector.broadcast %21 : vector<32x1xf32> to vector<32x132xf32>
    %23 = arith.addf %19, %22 : vector<32x132xf32>
    %cst_12 = arith.constant dense<0.000000e+00> : vector<132xf32>
    %24 = vector.multi_reduction <add>, %23, %cst_12 [0] : vector<32x132xf32> to vector<132xf32>
    %25 = vector.shape_cast %24 : vector<132xf32> to vector<1x132xf32>
    %cst_13 = arith.constant 3.200000e+01 : f32
    %26 = vector.broadcast %cst_13 : f32 to vector<1x132xf32>
    %27 = arith.divf %25, %26 : vector<1x132xf32>
    %28 = vector.broadcast %27 : vector<1x132xf32> to vector<32x132xf32>
    %29 = arith.subf %23, %28 : vector<32x132xf32>
    %30 = arith.mulf %29, %29 : vector<32x132xf32>
    %cst_14 = arith.constant dense<0.000000e+00> : vector<132xf32>
    %31 = vector.multi_reduction <add>, %30, %cst_14 [0] : vector<32x132xf32> to vector<132xf32>
    %32 = vector.shape_cast %31 : vector<132xf32> to vector<1x132xf32>
    %cst_15 = arith.constant 3.200000e+01 : f32
    %33 = vector.broadcast %cst_15 : f32 to vector<1x132xf32>
    %34 = arith.divf %32, %33 : vector<1x132xf32>
    %cst_16 = arith.constant 9.99999974E-6 : f32
    %35 = vector.broadcast %cst_16 : f32 to vector<1x132xf32>
    %36 = arith.addf %34, %35 : vector<1x132xf32>
    %37 = math.rsqrt %36 : vector<1x132xf32>
    %38 = vector.broadcast %37 : vector<1x132xf32> to vector<32x132xf32>
    %39 = arith.mulf %29, %38 : vector<32x132xf32>
    %c0_17 = arith.constant 0 : index
    %c0_18 = arith.constant 0 : index
    %c0_19 = arith.constant 0 : index
    %40 = vector.load %arg7[%c0_17, %c0_18, %c0_19] : memref<3x32x1xf32, #tpu.memory_space<vmem>>, vector<1x32x1xf32>
    %41 = vector.shape_cast %40 : vector<1x32x1xf32> to vector<32x1xf32>
    %42 = vector.broadcast %41 : vector<32x1xf32> to vector<32x132xf32>
    %43 = arith.mulf %39, %42 : vector<32x132xf32>
    %c0_20 = arith.constant 0 : index
    %c0_21 = arith.constant 0 : index
    %c0_22 = arith.constant 0 : index
    %44 = vector.load %arg8[%c0_20, %c0_21, %c0_22] : memref<3x32x1xf32, #tpu.memory_space<vmem>>, vector<1x32x1xf32>
    %45 = vector.shape_cast %44 : vector<1x32x1xf32> to vector<32x1xf32>
    %46 = vector.broadcast %45 : vector<32x1xf32> to vector<32x132xf32>
    %47 = arith.addf %43, %46 : vector<32x132xf32>
    %cst_23 = arith.constant 0.000000e+00 : f32
    %48 = vector.broadcast %cst_23 : f32 to vector<32x132xf32>
    %49 = arith.maximumf %47, %48 : vector<32x132xf32>
    %50 = vector.extract_strided_slice %3 {offsets = [0, 1], sizes = [1, 132], strides = [1, 1]} : vector<1x134xf32> to vector<1x132xf32>
    %51 = vector.broadcast %50 : vector<1x132xf32> to vector<32x132xf32>
    %52 = arith.mulf %49, %51 : vector<32x132xf32>
    %c0_24 = arith.constant 0 : index
    %c0_25 = arith.constant 0 : index
    %c0_26 = arith.constant 0 : index
    %53 = vector.load %arg5[%c0_24, %c0_25, %c0_26] : memref<2x32x96xf32, #tpu.memory_space<vmem>>, vector<1x32x96xf32>
    %54 = vector.shape_cast %53 : vector<1x32x96xf32> to vector<32x96xf32>
    %55 = vector.extract_strided_slice %52 {offsets = [0, 0], sizes = [32, 130], strides = [1, 1]} : vector<32x132xf32> to vector<32x130xf32>
    %56 = vector.extract_strided_slice %52 {offsets = [0, 1], sizes = [32, 130], strides = [1, 1]} : vector<32x132xf32> to vector<32x130xf32>
    %57 = vector.extract_strided_slice %52 {offsets = [0, 2], sizes = [32, 130], strides = [1, 1]} : vector<32x132xf32> to vector<32x130xf32>
    %58 = tpu.concatenate %55, %56, %57 in 0 : vector<32x130xf32>, vector<32x130xf32>, vector<32x130xf32> -> vector<96x130xf32>
    %cst_27 = arith.constant dense<0.000000e+00> : vector<32x130xf32>
    %59 = tpu.matmul %54, %58, %cst_27 {dimension_numbers = #tpu.dot_dimension_numbers<[1], [0], [0], [1], [0, 0, 1, 1], [], []>} : vector<32x96xf32>, vector<96x130xf32>, vector<32x130xf32> -> vector<32x130xf32>
    %c1 = arith.constant 1 : index
    %c0_28 = arith.constant 0 : index
    %c0_29 = arith.constant 0 : index
    %60 = vector.load %arg6[%c1, %c0_28, %c0_29] : memref<3x32x1xf32, #tpu.memory_space<vmem>>, vector<1x32x1xf32>
    %61 = vector.shape_cast %60 : vector<1x32x1xf32> to vector<32x1xf32>
    %62 = vector.broadcast %61 : vector<32x1xf32> to vector<32x130xf32>
    %63 = arith.addf %59, %62 : vector<32x130xf32>
    %cst_30 = arith.constant dense<0.000000e+00> : vector<130xf32>
    %64 = vector.multi_reduction <add>, %63, %cst_30 [0] : vector<32x130xf32> to vector<130xf32>
    %65 = vector.shape_cast %64 : vector<130xf32> to vector<1x130xf32>
    %cst_31 = arith.constant 3.200000e+01 : f32
    %66 = vector.broadcast %cst_31 : f32 to vector<1x130xf32>
    %67 = arith.divf %65, %66 : vector<1x130xf32>
    %68 = vector.broadcast %67 : vector<1x130xf32> to vector<32x130xf32>
    %69 = arith.subf %63, %68 : vector<32x130xf32>
    %70 = arith.mulf %69, %69 : vector<32x130xf32>
    %cst_32 = arith.constant dense<0.000000e+00> : vector<130xf32>
    %71 = vector.multi_reduction <add>, %70, %cst_32 [0] : vector<32x130xf32> to vector<130xf32>
    %72 = vector.shape_cast %71 : vector<130xf32> to vector<1x130xf32>
    %cst_33 = arith.constant 3.200000e+01 : f32
    %73 = vector.broadcast %cst_33 : f32 to vector<1x130xf32>
    %74 = arith.divf %72, %73 : vector<1x130xf32>
    %cst_34 = arith.constant 9.99999974E-6 : f32
    %75 = vector.broadcast %cst_34 : f32 to vector<1x130xf32>
    %76 = arith.addf %74, %75 : vector<1x130xf32>
    %77 = math.rsqrt %76 : vector<1x130xf32>
    %78 = vector.broadcast %77 : vector<1x130xf32> to vector<32x130xf32>
    %79 = arith.mulf %69, %78 : vector<32x130xf32>
    %c1_35 = arith.constant 1 : index
    %c0_36 = arith.constant 0 : index
    %c0_37 = arith.constant 0 : index
    %80 = vector.load %arg7[%c1_35, %c0_36, %c0_37] : memref<3x32x1xf32, #tpu.memory_space<vmem>>, vector<1x32x1xf32>
    %81 = vector.shape_cast %80 : vector<1x32x1xf32> to vector<32x1xf32>
    %82 = vector.broadcast %81 : vector<32x1xf32> to vector<32x130xf32>
    %83 = arith.mulf %79, %82 : vector<32x130xf32>
    %c1_38 = arith.constant 1 : index
    %c0_39 = arith.constant 0 : index
    %c0_40 = arith.constant 0 : index
    %84 = vector.load %arg8[%c1_38, %c0_39, %c0_40] : memref<3x32x1xf32, #tpu.memory_space<vmem>>, vector<1x32x1xf32>
    %85 = vector.shape_cast %84 : vector<1x32x1xf32> to vector<32x1xf32>
    %86 = vector.broadcast %85 : vector<32x1xf32> to vector<32x130xf32>
    %87 = arith.addf %83, %86 : vector<32x130xf32>
    %cst_41 = arith.constant 0.000000e+00 : f32
    %88 = vector.broadcast %cst_41 : f32 to vector<32x130xf32>
    %89 = arith.maximumf %87, %88 : vector<32x130xf32>
    %90 = vector.extract_strided_slice %3 {offsets = [0, 2], sizes = [1, 130], strides = [1, 1]} : vector<1x134xf32> to vector<1x130xf32>
    %91 = vector.broadcast %90 : vector<1x130xf32> to vector<32x130xf32>
    %92 = arith.mulf %89, %91 : vector<32x130xf32>
    %c1_42 = arith.constant 1 : index
    %c0_43 = arith.constant 0 : index
    %c0_44 = arith.constant 0 : index
    %93 = vector.load %arg5[%c1_42, %c0_43, %c0_44] : memref<2x32x96xf32, #tpu.memory_space<vmem>>, vector<1x32x96xf32>
    %94 = vector.shape_cast %93 : vector<1x32x96xf32> to vector<32x96xf32>
    %95 = vector.extract_strided_slice %92 {offsets = [0, 0], sizes = [32, 128], strides = [1, 1]} : vector<32x130xf32> to vector<32x128xf32>
    %96 = vector.extract_strided_slice %92 {offsets = [0, 1], sizes = [32, 128], strides = [1, 1]} : vector<32x130xf32> to vector<32x128xf32>
    %97 = vector.extract_strided_slice %92 {offsets = [0, 2], sizes = [32, 128], strides = [1, 1]} : vector<32x130xf32> to vector<32x128xf32>
    %98 = tpu.concatenate %95, %96, %97 in 0 : vector<32x128xf32>, vector<32x128xf32>, vector<32x128xf32> -> vector<96x128xf32>
    %cst_45 = arith.constant dense<0.000000e+00> : vector<32x128xf32>
    %99 = tpu.matmul %94, %98, %cst_45 {dimension_numbers = #tpu.dot_dimension_numbers<[1], [0], [0], [1], [0, 0, 1, 1], [], []>} : vector<32x96xf32>, vector<96x128xf32>, vector<32x128xf32> -> vector<32x128xf32>
    %c2 = arith.constant 2 : index
    %c0_46 = arith.constant 0 : index
    %c0_47 = arith.constant 0 : index
    %100 = vector.load %arg6[%c2, %c0_46, %c0_47] : memref<3x32x1xf32, #tpu.memory_space<vmem>>, vector<1x32x1xf32>
    %101 = vector.shape_cast %100 : vector<1x32x1xf32> to vector<32x1xf32>
    %102 = vector.broadcast %101 : vector<32x1xf32> to vector<32x128xf32>
    %103 = arith.addf %99, %102 : vector<32x128xf32>
    %cst_48 = arith.constant dense<0.000000e+00> : vector<128xf32>
    %104 = vector.multi_reduction <add>, %103, %cst_48 [0] : vector<32x128xf32> to vector<128xf32>
    %105 = vector.shape_cast %104 : vector<128xf32> to vector<1x128xf32>
    %cst_49 = arith.constant 3.200000e+01 : f32
    %106 = vector.broadcast %cst_49 : f32 to vector<1x128xf32>
    %107 = arith.divf %105, %106 : vector<1x128xf32>
    %108 = vector.broadcast %107 : vector<1x128xf32> to vector<32x128xf32>
    %109 = arith.subf %103, %108 : vector<32x128xf32>
    %110 = arith.mulf %109, %109 : vector<32x128xf32>
    %cst_50 = arith.constant dense<0.000000e+00> : vector<128xf32>
    %111 = vector.multi_reduction <add>, %110, %cst_50 [0] : vector<32x128xf32> to vector<128xf32>
    %112 = vector.shape_cast %111 : vector<128xf32> to vector<1x128xf32>
    %cst_51 = arith.constant 3.200000e+01 : f32
    %113 = vector.broadcast %cst_51 : f32 to vector<1x128xf32>
    %114 = arith.divf %112, %113 : vector<1x128xf32>
    %cst_52 = arith.constant 9.99999974E-6 : f32
    %115 = vector.broadcast %cst_52 : f32 to vector<1x128xf32>
    %116 = arith.addf %114, %115 : vector<1x128xf32>
    %117 = math.rsqrt %116 : vector<1x128xf32>
    %118 = vector.broadcast %117 : vector<1x128xf32> to vector<32x128xf32>
    %119 = arith.mulf %109, %118 : vector<32x128xf32>
    %c2_53 = arith.constant 2 : index
    %c0_54 = arith.constant 0 : index
    %c0_55 = arith.constant 0 : index
    %120 = vector.load %arg7[%c2_53, %c0_54, %c0_55] : memref<3x32x1xf32, #tpu.memory_space<vmem>>, vector<1x32x1xf32>
    %121 = vector.shape_cast %120 : vector<1x32x1xf32> to vector<32x1xf32>
    %122 = vector.broadcast %121 : vector<32x1xf32> to vector<32x128xf32>
    %123 = arith.mulf %119, %122 : vector<32x128xf32>
    %c2_56 = arith.constant 2 : index
    %c0_57 = arith.constant 0 : index
    %c0_58 = arith.constant 0 : index
    %124 = vector.load %arg8[%c2_56, %c0_57, %c0_58] : memref<3x32x1xf32, #tpu.memory_space<vmem>>, vector<1x32x1xf32>
    %125 = vector.shape_cast %124 : vector<1x32x1xf32> to vector<32x1xf32>
    %126 = vector.broadcast %125 : vector<32x1xf32> to vector<32x128xf32>
    %127 = arith.addf %123, %126 : vector<32x128xf32>
    %cst_59 = arith.constant 0.000000e+00 : f32
    %128 = vector.broadcast %cst_59 : f32 to vector<32x128xf32>
    %129 = arith.maximumf %127, %128 : vector<32x128xf32>
    %c0_60 = arith.constant 0 : index
    %c0_61 = arith.constant 0 : index
    %130 = vector.load %arg9[%c0_60, %c0_61] : memref<4x32xf32, #tpu.memory_space<vmem>>, vector<4x32xf32>
    %cst_62 = arith.constant dense<0.000000e+00> : vector<4x128xf32>
    %131 = tpu.matmul %130, %129, %cst_62 {dimension_numbers = #tpu.dot_dimension_numbers<[1], [0], [0], [1], [0, 0, 1, 1], [], []>} : vector<4x32xf32>, vector<32x128xf32>, vector<4x128xf32> -> vector<4x128xf32>
    %c0_63 = arith.constant 0 : index
    %c0_64 = arith.constant 0 : index
    %132 = vector.load %arg10[%c0_63, %c0_64] : memref<4x1xf32, #tpu.memory_space<vmem>>, vector<4x1xf32>
    %133 = vector.broadcast %132 : vector<4x1xf32> to vector<4x128xf32>
    %134 = arith.addf %131, %133 : vector<4x128xf32>
    %135 = vector.broadcast %7 : vector<1x128xf32> to vector<4x128xf32>
    %136 = arith.mulf %134, %135 : vector<4x128xf32>
    %137 = arith.addf %6, %136 : vector<4x128xf32>
    %c0_65 = arith.constant 0 : index
    %c0_66 = arith.constant 0 : index
    %c0_67 = arith.constant 0 : index
    %138 = vector.load %arg11[%c0_65, %c0_66, %c0_67] : memref<1x4x128xf32, #tpu.memory_space<vmem>>, vector<1x4x128xf32>
    %139 = vector.shape_cast %138 : vector<1x4x128xf32> to vector<4x128xf32>
    %140 = vector.shape_cast %137 : vector<4x128xf32> to vector<1x4x128xf32>
    tpu.vector_store %arg11[%c0_65, %c0_66, %c0_67], %140 {strides = array<i32>} : memref<1x4x128xf32, #tpu.memory_space<vmem>>, vector<1x4x128xf32>,
    return
  }
  func.func @transform_0(%arg0: i32, %arg1: i32) -> (i32, i32, i32) {
    %c0_i32 = arith.constant 0 : i32
    %c0_i32_0 = arith.constant 0 : i32
    %c0_i32_1 = arith.constant 0 : i32
    return %arg0, %c0_i32, %c0_i32_0 : i32, i32, i32
  }
  func.func @transform_1(%arg0: i32, %arg1: i32) -> (i32, i32, i32) {
    %c0_i32 = arith.constant 0 : i32
    %c0_i32_0 = arith.constant 0 : i32
    %c0_i32_1 = arith.constant 0 : i32
    return %arg0, %c0_i32, %c0_i32_0 : i32, i32, i32
  }
  func.func @transform_2(%arg0: i32, %arg1: i32) -> (i32, i32) {
    %c0_i32 = arith.constant 0 : i32
    %c0_i32_0 = arith.constant 0 : i32
    %c0_i32_1 = arith.constant 0 : i32
    return %c0_i32, %c0_i32_0 : i32, i32
  }
  func.func @transform_3(%arg0: i32, %arg1: i32) -> (i32, i32, i32) {
    %c0_i32 = arith.constant 0 : i32
    %c0_i32_0 = arith.constant 0 : i32
    %c0_i32_1 = arith.constant 0 : i32
    %c0_i32_2 = arith.constant 0 : i32
    return %c0_i32, %c0_i32_0, %c0_i32_1 : i32, i32, i32
  }
  func.func @transform_4(%arg0: i32, %arg1: i32) -> (i32, i32, i32) {
    %c0_i32 = arith.constant 0 : i32
    %c0_i32_0 = arith.constant 0 : i32
    %c0_i32_1 = arith.constant 0 : i32
    %c0_i32_2 = arith.constant 0 : i32
    return %c0_i32, %c0_i32_0, %c0_i32_1 : i32, i32, i32
  }
  func.func @transform_5(%arg0: i32, %arg1: i32) -> (i32, i32, i32) {
    %c0_i32 = arith.constant 0 : i32
    %c0_i32_0 = arith.constant 0 : i32
    %c0_i32_1 = arith.constant 0 : i32
    %c0_i32_2 = arith.constant 0 : i32
    return %c0_i32, %c0_i32_0, %c0_i32_1 : i32, i32, i32
  }
  func.func @transform_6(%arg0: i32, %arg1: i32) -> (i32, i32, i32) {
    %c0_i32 = arith.constant 0 : i32
    %c0_i32_0 = arith.constant 0 : i32
    %c0_i32_1 = arith.constant 0 : i32
    %c0_i32_2 = arith.constant 0 : i32
    return %c0_i32, %c0_i32_0, %c0_i32_1 : i32, i32, i32
  }
  func.func @transform_7(%arg0: i32, %arg1: i32) -> (i32, i32) {
    %c0_i32 = arith.constant 0 : i32
    %c0_i32_0 = arith.constant 0 : i32
    %c0_i32_1 = arith.constant 0 : i32
    return %c0_i32, %c0_i32_0 : i32, i32
  }
  func.func @transform_8(%arg0: i32, %arg1: i32) -> (i32, i32) {
    %c0_i32 = arith.constant 0 : i32
    %c0_i32_0 = arith.constant 0 : i32
    %c0_i32_1 = arith.constant 0 : i32
    return %c0_i32, %c0_i32_0 : i32, i32
  }
  func.func @transform_9(%arg0: i32, %arg1: i32) -> (i32, i32, i32) {
    %c0_i32 = arith.constant 0 : i32
    %c0_i32_0 = arith.constant 0 : i32
    return %arg0, %c0_i32, %arg1 : i32, i32, i32
  }
}

</mosaic_0001>

<llo_original>
// kernel: conv_relu_norm_forward.1
$region0: #{conv_relu_norm_forward.1}
  #allocation0 [shape = 'u32[]', space=smem, size = 0x4, offset = 0x4, fixed_abs, tag = 'smem constant byte address 0x4 - core index']
  #allocation1 [shape = 'u32[144,128]{1,0:T(1,128)}', space=vmem, size = 0x12000, scoped, tag = 'internal scratch']
  %s0 = inlined_call_operand.vmem [shape: f32[2,4,134], index: 0, kind: input, shape index: {}]
  %s1 = inlined_call_operand.vmem [shape: f32[2,1,134], index: 1, kind: input, shape index: {}]
  %s2 = inlined_call_operand.vmem [shape: f32[32,12], index: 2, kind: input, shape index: {}]
  %s3 = inlined_call_operand.vmem [shape: f32[2,32,96], index: 3, kind: input, shape index: {}]
  %s4 = inlined_call_operand.vmem [shape: f32[3,32,1], index: 4, kind: input, shape index: {}]
  %s5 = inlined_call_operand.vmem [shape: f32[3,32,1], index: 5, kind: input, shape index: {}]
  %s6 = inlined_call_operand.vmem [shape: f32[3,32,1], index: 6, kind: input, shape index: {}]
  %s7 = inlined_call_operand.vmem [shape: f32[4,32], index: 7, kind: input, shape index: {}]
  %s8 = inlined_call_operand.vmem [shape: f32[4,1], index: 8, kind: input, shape index: {}]
  %s9 = inlined_call_operand.hbm [shape: f32[2,4,128], index: 9, kind: output, shape index: {}]
  %s10 = sld [smem:[#allocation0]]
  $region69: #{conv_relu_norm_forward.1} parent=0
    _
  %s12 = ssub.s32 1, %s10
  %s13 = scalar_select 0, %s12, %s10
  $region1: #{conv_relu_norm_forward.1} parent=0
    #allocation2 [shape = 'u8[4096]{0}', space=vmem, size = 0x1000, scoped, tag = 'output window, operand 0']
    #allocation3 [shape = 's32[2]{0}', space=sflag, size = 0x8, scoped, tag = 'scoped memory for conv_relu_norm_forward.1']
    %14 = vsyncpa [#allocation3], 0
    %s15 = scalar_lea.sflag [#allocation3], 1
    %16 = vsyncpa %s15, 0
    loop: start=0, step=1, limit=4
    $region2: #{conv_relu_norm_forward.1} parent=1 // loop_pre_header
      _
    $region3: #{conv_relu_norm_forward.1} parent=1 // loop_header
      %s18 = sphi 0, %s22
      %p19 = scmp.ge.s32.totalorder %s18, 4
      %s25 = sphi 0, %s37
      %s26 = sphi 0, %s33
      %s27 = sphi 0, %s25
      %s28 = sphi 0, %s26
      %s29 = sphi 0, %s27
      %s30 = sphi 0, %s28
      %s40 = sphi 0, %s42
      %s43 = sphi 0, %s40
      %s44 = sphi 0, %s43
      %s60 = sphi 0, %s44
      %s66 = sphi 0, %s68
      %s69 = sphi 0, %s66
      %s70 = sphi 0, %s69
      %s86 = sphi 0, %s70
      %s90 = sphi 0, %s90
      %s92 = sphi 0, %s90
      %s93 = sphi 0, %s92
      %s107 = sphi 0, %s93
      %s111 = sphi 0, %s111
      %s113 = sphi 0, %s111
      %s114 = sphi 0, %s113
      %s128 = sphi 0, %s114
      %s132 = sphi 0, %s132
      %s134 = sphi 0, %s132
      %s135 = sphi 0, %s134
      %s149 = sphi 0, %s135
      %s153 = sphi 0, %s153
      %s155 = sphi 0, %s153
      %s156 = sphi 0, %s155
      %s170 = sphi 0, %s156
      %s174 = sphi 0, %s174
      %s176 = sphi 0, %s174
      %s177 = sphi 0, %s176
      %s191 = sphi 0, %s177
      %s195 = sphi 0, %s195
      %s197 = sphi 0, %s195
      %s198 = sphi 0, %s197
      %s212 = sphi 0, %s198
      %s216 = sphi 0, %s216
      %s218 = sphi 0, %s216
      %s219 = sphi 0, %s218
      %s233 = sphi 0, %s219
      %s241 = sphi 0, %s243
      %s244 = sphi 0, %s241
      %s245 = sphi 0, %s244
      %s261 = sphi 0, %s245
    $region4: #{conv_relu_norm_forward.1} parent=1 // loop_header_branch
      %21 = sbr.rel (%p19) target = $region8
    $region5: #{conv_relu_norm_forward.1} parent=1 // loop_body
      %s23 = ssub.s32 %s18, 1
      %s24 = ssub.s32 %s18, 2
      %s31 = sadd.s32 1, %s26
      %p32 = scmp.ge.s32.totalorder %s31, 1
      %s33 = scalar_select %p32, 0, %s31
      %s34 = sadd.s32 1, %s25
      %s35 = scalar_select %p32, %s34, %s25
      %p36 = scmp.ge.s32.totalorder %s35, 2
      %s37 = scalar_select %p36, 0, %s35
      %s38 = ssub.s32 %s25, %s37
      %p39 = scmp.eq.s32.totalorder %s38, 0
      %s41 = sadd.s32 %s40, 1
      %s42 = scalar_select %p39, %s40, %s41
      %p45 = pneg %p39
      %p46 = scmp.eq.s32.totalorder %s18, 1
      %p47 = por %p45, %p46
      %p48 = scmp.ne.s32.totalorder %s40, %s43
      %p49 = scmp.eq.s32.totalorder %s18, 0
      %p50 = por %p48, %p49
      %p51 = scmp.ne.s32.totalorder %s40, %s43
      %p52 = scmp.eq.s32.totalorder %s23, 1
      %p53 = por %p51, %p52
      %p54 = scmp.ne.s32.totalorder %s43, %s44
      %p55 = scmp.eq.s32.totalorder %s23, 0
      %p56 = por %p54, %p55
      %p57 = scmp.ne.s32.totalorder %s43, %s44
      %p58 = scmp.eq.s32.totalorder %s24, 1
      %p59 = por %p57, %p58
      %p61 = scmp.ne.s32.totalorder %s44, %s60
      %p62 = scmp.eq.s32.totalorder %s24, 0
      %p63 = por %p61, %p62
      %s64 = ssub.s32 %s25, %s37
      %p65 = scmp.eq.s32.totalorder %s64, 0
      %s67 = sadd.s32 %s66, 1
      %s68 = scalar_select %p65, %s66, %s67
      %p71 = pneg %p65
      %p72 = scmp.eq.s32.totalorder %s18, 1
      %p73 = por %p71, %p72
      %p74 = scmp.ne.s32.totalorder %s66, %s69
      %p75 = scmp.eq.s32.totalorder %s18, 0
      %p76 = por %p74, %p75
      %p77 = scmp.ne.s32.totalorder %s66, %s69
      %p78 = scmp.eq.s32.totalorder %s23, 1
      %p79 = por %p77, %p78
      %p80 = scmp.ne.s32.totalorder %s69, %s70
      %p81 = scmp.eq.s32.totalorder %s23, 0
      %p82 = por %p80, %p81
      %p83 = scmp.ne.s32.totalorder %s69, %s70
      %p84 = scmp.eq.s32.totalorder %s24, 1
      %p85 = por %p83, %p84
      %p87 = scmp.ne.s32.totalorder %s70, %s86
      %p88 = scmp.eq.s32.totalorder %s24, 0
      %p89 = por %p87, %p88
      %s91 = sadd.s32 %s90, 1
      %p94 = scmp.eq.s32.totalorder %s18, 1
      %p95 = scmp.ne.s32.totalorder %s90, %s92
      %p96 = scmp.eq.s32.totalorder %s18, 0
      %p97 = por %p95, %p96
      %p98 = scmp.ne.s32.totalorder %s90, %s92
      %p99 = scmp.eq.s32.totalorder %s23, 1
      %p100 = por %p98, %p99
      %p101 = scmp.ne.s32.totalorder %s92, %s93
      %p102 = scmp.eq.s32.totalorder %s23, 0
      %p103 = por %p101, %p102
      %p104 = scmp.ne.s32.totalorder %s92, %s93
      %p105 = scmp.eq.s32.totalorder %s24, 1
      %p106 = por %p104, %p105
      %p108 = scmp.ne.s32.totalorder %s93, %s107
      %p109 = scmp.eq.s32.totalorder %s24, 0
      %p110 = por %p108, %p109
      %s112 = sadd.s32 %s111, 1
      %p115 = scmp.eq.s32.totalorder %s18, 1
      %p116 = scmp.ne.s32.totalorder %s111, %s113
      %p117 = scmp.eq.s32.totalorder %s18, 0
      %p118 = por %p116, %p117
      %p119 = scmp.ne.s32.totalorder %s111, %s113
      %p120 = scmp.eq.s32.totalorder %s23, 1
      %p121 = por %p119, %p120
      %p122 = scmp.ne.s32.totalorder %s113, %s114
      %p123 = scmp.eq.s32.totalorder %s23, 0
      %p124 = por %p122, %p123
      %p125 = scmp.ne.s32.totalorder %s113, %s114
      %p126 = scmp.eq.s32.totalorder %s24, 1
      %p127 = por %p125, %p126
      %p129 = scmp.ne.s32.totalorder %s114, %s128
      %p130 = scmp.eq.s32.totalorder %s24, 0
      %p131 = por %p129, %p130
      %s133 = sadd.s32 %s132, 1
      %p136 = scmp.eq.s32.totalorder %s18, 1
      %p137 = scmp.ne.s32.totalorder %s132, %s134
      %p138 = scmp.eq.s32.totalorder %s18, 0
      %p139 = por %p137, %p138
      %p140 = scmp.ne.s32.totalorder %s132, %s134
      %p141 = scmp.eq.s32.totalorder %s23, 1
      %p142 = por %p140, %p141
      %p143 = scmp.ne.s32.totalorder %s134, %s135
      %p144 = scmp.eq.s32.totalorder %s23, 0
      %p145 = por %p143, %p144
      %p146 = scmp.ne.s32.totalorder %s134, %s135
      %p147 = scmp.eq.s32.totalorder %s24, 1
      %p148 = por %p146, %p147
      %p150 = scmp.ne.s32.totalorder %s135, %s149
      %p151 = scmp.eq.s32.totalorder %s24, 0
      %p152 = por %p150, %p151
      %s154 = sadd.s32 %s153, 1
      %p157 = scmp.eq.s32.totalorder %s18, 1
      %p158 = scmp.ne.s32.totalorder %s153, %s155
      %p159 = scmp.eq.s32.totalorder %s18, 0
      %p160 = por %p158, %p159
      %p161 = scmp.ne.s32.totalorder %s153, %s155
      %p162 = scmp.eq.s32.totalorder %s23, 1
      %p163 = por %p161, %p162
      %p164 = scmp.ne.s32.totalorder %s155, %s156
      %p165 = scmp.eq.s32.totalorder %s23, 0
      %p166 = por %p164, %p165
      %p167 = scmp.ne.s32.totalorder %s155, %s156
      %p168 = scmp.eq.s32.totalorder %s24, 1
      %p169 = por %p167, %p168
      %p171 = scmp.ne.s32.totalorder %s156, %s170
      %p172 = scmp.eq.s32.totalorder %s24, 0
      %p173 = por %p171, %p172
      %s175 = sadd.s32 %s174, 1
      %p178 = scmp.eq.s32.totalorder %s18, 1
      %p179 = scmp.ne.s32.totalorder %s174, %s176
      %p180 = scmp.eq.s32.totalorder %s18, 0
      %p181 = por %p179, %p180
      %p182 = scmp.ne.s32.totalorder %s174, %s176
      %p183 = scmp.eq.s32.totalorder %s23, 1
      %p184 = por %p182, %p183
      %p185 = scmp.ne.s32.totalorder %s176, %s177
      %p186 = scmp.eq.s32.totalorder %s23, 0
      %p187 = por %p185, %p186
      %p188 = scmp.ne.s32.totalorder %s176, %s177
      %p189 = scmp.eq.s32.totalorder %s24, 1
      %p190 = por %p188, %p189
      %p192 = scmp.ne.s32.totalorder %s177, %s191
      %p193 = scmp.eq.s32.totalorder %s24, 0
      %p194 = por %p192, %p193
      %s196 = sadd.s32 %s195, 1
      %p199 = scmp.eq.s32.totalorder %s18, 1
      %p200 = scmp.ne.s32.totalorder %s195, %s197
      %p201 = scmp.eq.s32.totalorder %s18, 0
      %p202 = por %p200, %p201
      %p203 = scmp.ne.s32.totalorder %s195, %s197
      %p204 = scmp.eq.s32.totalorder %s23, 1
      %p205 = por %p203, %p204
      %p206 = scmp.ne.s32.totalorder %s197, %s198
      %p207 = scmp.eq.s32.totalorder %s23, 0
      %p208 = por %p206, %p207
      %p209 = scmp.ne.s32.totalorder %s197, %s198
      %p210 = scmp.eq.s32.totalorder %s24, 1
      %p211 = por %p209, %p210
      %p213 = scmp.ne.s32.totalorder %s198, %s212
      %p214 = scmp.eq.s32.totalorder %s24, 0
      %p215 = por %p213, %p214
      %s217 = sadd.s32 %s216, 1
      %p220 = scmp.eq.s32.totalorder %s18, 1
      %p221 = scmp.ne.s32.totalorder %s216, %s218
      %p222 = scmp.eq.s32.totalorder %s18, 0
      %p223 = por %p221, %p222
      %p224 = scmp.ne.s32.totalorder %s216, %s218
      %p225 = scmp.eq.s32.totalorder %s23, 1
      %p226 = por %p224, %p225
      %p227 = scmp.ne.s32.totalorder %s218, %s219
      %p228 = scmp.eq.s32.totalorder %s23, 0
      %p229 = por %p227, %p228
      %p230 = scmp.ne.s32.totalorder %s218, %s219
      %p231 = scmp.eq.s32.totalorder %s24, 1
      %p232 = por %p230, %p231
      %p234 = scmp.ne.s32.totalorder %s219, %s233
      %p235 = scmp.eq.s32.totalorder %s24, 0
      %p236 = por %p234, %p235
      %s237 = ssub.s32 %s25, %s37
      %s238 = ssub.s32 %s26, %s33
      %s239 = sor.u32 %s237, %s238
      %p240 = scmp.eq.s32.totalorder %s239, 0
      %s242 = sadd.s32 %s241, 1
      %s243 = scalar_select %p240, %s241, %s242
      %p246 = pneg %p240
      %p247 = scmp.eq.s32.totalorder %s18, 1
      %p248 = por %p246, %p247
      %p249 = scmp.ne.s32.totalorder %s241, %s244
      %p250 = scmp.eq.s32.totalorder %s18, 0
      %p251 = por %p249, %p250
      %p252 = scmp.ne.s32.totalorder %s241, %s244
      %p253 = scmp.eq.s32.totalorder %s23, 1
      %p254 = por %p252, %p253
      %p255 = scmp.ne.s32.totalorder %s244, %s245
      %p256 = scmp.eq.s32.totalorder %s23, 0
      %p257 = por %p255, %p256
      %p258 = scmp.ne.s32.totalorder %s244, %s245
      %p259 = scmp.eq.s32.totalorder %s24, 1
      %p260 = por %p258, %p259
      %p262 = scmp.ne.s32.totalorder %s245, %s261
      %p263 = scmp.eq.s32.totalorder %s24, 0
      %p264 = por %p262, %p263
      %p265 = scmp.le.s32.totalorder 1, %s18
      %p266 = scmp.lt.s32.totalorder %s18, 3
      %p267 = pnand %p265, %p266
      %p268 = pneg %p267
      // Predicated region
      $region9: #{conv_relu_norm_forward.1} parent=5 // pred_check
        _
      $region10: #{conv_relu_norm_forward.1} parent=5 // pred_check_branch
        %270 = sbr.rel (%p267) target = $region12
      $region11: #{conv_relu_norm_forward.1} parent=5 // pred_region
        %s271 = ssub.s32 %s18, 1
        // Predicated region
        $region13: #{conv_relu_norm_forward.1} parent=11 // pred_check
          %p272 = pneg %p56
        $region14: #{conv_relu_norm_forward.1} parent=11 // pred_check_branch
          %274 = sbr.rel (%p272) target = $region16
        $region15: #{conv_relu_norm_forward.1} parent=11 // pred_region
          %p275 = scmp.lt.s32.totalorder %s27, 1
          %s276 = scalar_select %p275, %s27, 1
          %s277 = smul.addr %s276, 2
          %s278 = smul.addr %s277, 4
          %s279 = scalar_lea.vmem %s0, %s278
        $region16: #{conv_relu_norm_forward.1} parent=11 // pred_fallthru
          _
        // Predicated region
        $region17: #{conv_relu_norm_forward.1} parent=11 // pred_check
          %p280 = pneg %p82
        $region18: #{conv_relu_norm_forward.1} parent=11 // pred_check_branch
          %282 = sbr.rel (%p280) target = $region20
        $region19: #{conv_relu_norm_forward.1} parent=11 // pred_region
          %p283 = scmp.lt.s32.totalorder %s27, 1
          %s284 = scalar_select %p283, %s27, 1
          %s285 = smul.addr %s284, 2
          %s286 = scalar_lea.vmem %s1, %s285
        $region20: #{conv_relu_norm_forward.1} parent=11 // pred_fallthru
          _
        // Predicated region
        $region21: #{conv_relu_norm_forward.1} parent=11 // pred_check
          %p287 = pneg %p103
        $region22: #{conv_relu_norm_forward.1} parent=11 // pred_check_branch
          %289 = sbr.rel (%p287) target = $region24
        $region23: #{conv_relu_norm_forward.1} parent=11 // pred_region
          _
        $region24: #{conv_relu_norm_forward.1} parent=11 // pred_fallthru
          _
        // Predicated region
        $region25: #{conv_relu_norm_forward.1} parent=11 // pred_check
          %p290 = pneg %p124
        $region26: #{conv_relu_norm_forward.1} parent=11 // pred_check_branch
          %292 = sbr.rel (%p290) target = $region28
        $region27: #{conv_relu_norm_forward.1} parent=11 // pred_region
          _
        $region28: #{conv_relu_norm_forward.1} parent=11 // pred_fallthru
          _
        // Predicated region
        $region29: #{conv_relu_norm_forward.1} parent=11 // pred_check
          %p293 = pneg %p145
        $region30: #{conv_relu_norm_forward.1} parent=11 // pred_check_branch
          %295 = sbr.rel (%p293) target = $region32
        $region31: #{conv_relu_norm_forward.1} parent=11 // pred_region
          _
        $region32: #{conv_relu_norm_forward.1} parent=11 // pred_fallthru
          _
        // Predicated region
        $region33: #{conv_relu_norm_forward.1} parent=11 // pred_check
          %p296 = pneg %p166
        $region34: #{conv_relu_norm_forward.1} parent=11 // pred_check_branch
          %298 = sbr.rel (%p296) target = $region36
        $region35: #{conv_relu_norm_forward.1} parent=11 // pred_region
          _
        $region36: #{conv_relu_norm_forward.1} parent=11 // pred_fallthru
          _
        // Predicated region
        $region37: #{conv_relu_norm_forward.1} parent=11 // pred_check
          %p299 = pneg %p187
        $region38: #{conv_relu_norm_forward.1} parent=11 // pred_check_branch
          %301 = sbr.rel (%p299) target = $region40
        $region39: #{conv_relu_norm_forward.1} parent=11 // pred_region
          _
        $region40: #{conv_relu_norm_forward.1} parent=11 // pred_fallthru
          _
        // Predicated region
        $region41: #{conv_relu_norm_forward.1} parent=11 // pred_check
          %p302 = pneg %p208
        $region42: #{conv_relu_norm_forward.1} parent=11 // pred_check_branch
          %304 = sbr.rel (%p302) target = $region44
        $region43: #{conv_relu_norm_forward.1} parent=11 // pred_region
          _
        $region44: #{conv_relu_norm_forward.1} parent=11 // pred_fallthru
          _
        // Predicated region
        $region45: #{conv_relu_norm_forward.1} parent=11 // pred_check
          %p305 = pneg %p229
        $region46: #{conv_relu_norm_forward.1} parent=11 // pred_check_branch
          %307 = sbr.rel (%p305) target = $region48
        $region47: #{conv_relu_norm_forward.1} parent=11 // pred_region
          _
        $region48: #{conv_relu_norm_forward.1} parent=11 // pred_fallthru
          _
      $region12: #{conv_relu_norm_forward.1} parent=5 // pred_fallthru
        _
      %p308 = scmp.lt.s32.totalorder %s18, 2
      // Predicated region
      $region49: #{conv_relu_norm_forward.1} parent=5 // pred_check
        %p309 = pneg %p308
      $region50: #{conv_relu_norm_forward.1} parent=5 // pred_check_branch
        %311 = sbr.rel (%p309) target = $region52
      $region51: #{conv_relu_norm_forward.1} parent=5 // pred_region
        _
      $region52: #{conv_relu_norm_forward.1} parent=5 // pred_fallthru
        _
      %p312 = scmp.le.s32.totalorder 1, %s18
      %p313 = scmp.lt.s32.totalorder %s18, 3
      %p314 = pnand %p312, %p313
      %p315 = pneg %p314
      // Predicated region
      $region53: #{conv_relu_norm_forward.1} parent=5 // pred_check
        _
      $region54: #{conv_relu_norm_forward.1} parent=5 // pred_check_branch
        %317 = sbr.rel (%p314) target = $region56
      $region55: #{conv_relu_norm_forward.1} parent=5 // pred_region
        %s318 = ssub.s32 %s18, 1
        %p319 = scmp.lt.s32.totalorder %s27, 1
        %s320 = scalar_select %p319, %s27, 1
        %s321 = smul.addr %s320, 2
        %s322 = smul.addr %s321, 4
        %s323 = scalar_lea.vmem %s0, %s322
        %p324 = pneg %p56
        %p325 = pneg %p53
        %p326 = scmp.lt.s32.totalorder %s27, 1
        %s327 = scalar_select %p326, %s27, 1
        %s328 = smul.addr %s327, 2
        %s329 = scalar_lea.vmem %s1, %s328
        %p330 = pneg %p82
        %p331 = pneg %p79
        %p332 = pneg %p103
        %p333 = pneg %p100
        %p334 = pneg %p124
        %p335 = pneg %p121
        %p336 = pneg %p145
        %p337 = pneg %p142
        %p338 = pneg %p166
        %p339 = pneg %p163
        %p340 = pneg %p187
        %p341 = pneg %p184
        %p342 = pneg %p208
        %p343 = pneg %p205
        %p344 = pneg %p229
        %p345 = pneg %p226
        %p346 = pneg %p257
        %p347 = pneg %p254
        %s348 = sand.u32 %s244, 1
        %s349 = scalar_lea.sflag [#allocation3], %s348
        %s350 = sand.u32 %s244, 1
        %s351 = smul.addr %s350, 4
        %s352 = scalar_lea.vmem [#allocation2], %s351
        %p353 = scmp.lt.s32.totalorder %s27, 1
        %s354 = scalar_select %p353, %s27, 1
        %s355 = smul.addr %s354, 2
        %s356 = smul.addr %s355, 4
        %s357 = scalar_lea.vmem %s0, %s356
        %p358 = scmp.lt.s32.totalorder %s27, 1
        %s359 = scalar_select %p358, %s27, 1
        %s360 = smul.addr %s359, 2
        %s361 = scalar_lea.vmem %s1, %s360
        %v362 = vld [vmem:[%s357] sm:$0xff]
        %v363 = vld [vmem:[%s361] sm:$0x3]
        %v365 = vlaneseq
        %v366 = vshrl.u32 %v365, 7
        %v367 = vsub.s32 0, %v366
        %v368 = vrot.slane %v363, %v367
        %v369 = vlaneseq
        %v370 = vshrl.u32 %v369, 7
        %v371 = vsub.s32 1, %v370
        %v372 = vrot.slane %v363, %v371
        %v373 = vcombine.low %v368, %v372
        %v375 = vmul.f32 %v362, %v373
        %v376 = vld [vmem:[%s2] sm:$0xff]
        %v377 = vld [vmem:[%s2 + $0x8] sm:$0xff]
        %v378 = vld [vmem:[%s2 + $0x10] sm:$0xff]
        %v379 = vld [vmem:[%s2 + $0x18] sm:$0xff]
        %384 = vrot.lane.b32.xlu0 %v376, 124
        %v385 = vpop.permute.xlu0 %384
        %386 = vrot.lane.b32.xlu0 %v377, 124
        %v387 = vpop.permute.xlu0 %386
        %388 = vrot.lane.b32.xlu0 %v378, 124
        %v389 = vpop.permute.xlu0 %388
        %390 = vrot.lane.b32.xlu0 %v379, 124
        %v391 = vpop.permute.xlu0 %390
        %v393 = vcombine.high %v375, %v375
        %394 = vrot.lane.b32.xlu0 %v375, 127
        %v395 = vpop.permute.xlu0 %394
        %396 = vrot.lane.b32.xlu0 %v393, 127
        %v397 = vpop.permute.xlu0 %396
        %vm398 = vcmask 1039360
        %v399 = vsel %vm398, %v395, %v397
        %vm400 = vcmask 31744
        %v401 = vsel %vm400, %v385, 0
        %v403 = vsel %vm400, %v387, 0
        %v405 = vsel %vm400, %v389, 0
        %v407 = vsel %vm400, %v391, 0
        %vm409 = vcmask 1043456
        %v410 = vsel %vm409, %v399, 0
        %v412 = vsel %vm409, %v397, 0
        %414 = vmatprep.subr.mxu0 %v412
        %415 = vmatpush1.msra.mxu0 %v410
        %416 = vmatprep.subr.mxu0 0.0
        %417 = vmatpush1.msra.mxu0 0.0
        %418 = vmatprep.subr.mxu0 0.0
        %419 = vmatpush1.msra.mxu0 0.0
        %420 = vmatprep.subr.mxu0 0.0
        %421 = vmatpush1.msra.mxu0 0.0
        %422 = vmatprep.subr.mxu0 0.0
        %423 = vmatpush1.msra.mxu0 0.0
        %424 = vmatprep.subr.mxu0 0.0
        %425 = vmatpush1.msra.mxu0 0.0
        %426 = vmatprep.subr.mxu0 0.0
        %427 = vmatpush1.msra.mxu0 0.0
        %428 = vmatprep.subr.mxu0 0.0
        %429 = vmatpush1.msra.mxu0 0.0
        %430 = vmatprep.subr.mxu0 0.0
        %431 = vmatpush1.msra.mxu0 0.0
        %432 = vmatprep.subr.mxu0 0.0
        %433 = vmatpush1.msra.mxu0 0.0
        %434 = vmatprep.subr.mxu0 0.0
        %435 = vmatpush1.msra.mxu0 0.0
        %436 = vmatprep.subr.mxu0 0.0
        %437 = vmatpush1.msra.mxu0 0.0
        %438 = vmatprep.subr.mxu0 0.0
        %439 = vmatpush1.msra.mxu0 0.0
        %440 = vmatprep.subr.mxu0 0.0
        %441 = vmatpush1.msra.mxu0 0.0
        %442 = vmatprep.subr.mxu0 0.0
        %443 = vmatpush1.msra.mxu0 0.0
        %444 = vmatprep.subr.mxu0 0.0
        %445 = vmatpush1.msra.mxu0 0.0
        %446 = vmatprep.subr.mxu0 0.0
        %447 = vmatpush1.msra.mxu0 0.0
        %448 = vmatprep.subr.mxu0 0.0
        %449 = vmatpush1.msra.mxu0 0.0
        %450 = vmatprep.subr.mxu0 0.0
        %451 = vmatpush1.msra.mxu0 0.0
        %452 = vmatprep.subr.mxu0 0.0
        %453 = vmatpush1.msra.mxu0 0.0
        %454 = vmatprep.subr.mxu0 0.0
        %455 = vmatpush1.msra.mxu0 0.0
        %456 = vmatprep.subr.mxu0 0.0
        %457 = vmatpush1.msra.mxu0 0.0
        %458 = vmatprep.subr.mxu0 0.0
        %459 = vmatpush1.msra.mxu0 0.0
        %460 = vmatprep.subr.mxu0 0.0
        %461 = vmatpush1.msra.mxu0 0.0
        %462 = vmatprep.subr.mxu0 0.0
        %463 = vmatpush1.msra.mxu0 0.0
        %464 = vmatprep.subr.mxu0 0.0
        %465 = vmatpush1.msra.mxu0 0.0
        %466 = vmatprep.subr.mxu0 0.0
        %467 = vmatpush1.msra.mxu0 0.0
        %468 = vmatprep.subr.mxu0 0.0
        %469 = vmatpush1.msra.mxu0 0.0
        %470 = vmatprep.subr.mxu0 0.0
        %471 = vmatpush1.msra.mxu0 0.0
        %472 = vmatprep.subr.mxu0 0.0
        %473 = vmatpush1.msra.mxu0 0.0
        %474 = vmatprep.subr.mxu0 0.0
        %475 = vmatpush1.msra.mxu0 0.0
        %476 = vmatprep.subr.mxu0 0.0
        %477 = vmatpush1.msra.mxu0 0.0
        %478 = vmatprep.mubr.f32.mxu0 0.0
        %479 = vmatmul.mubr.f32.gmra.mrb[0].mxu0 %v401
        %v480 = vpop.f32.mrb[0].mxu0
        %v481 = vadd.f32 0.0, %v480
        %v482 = vpop.f32.mrb[0].mxu0
        %v483 = vadd.f32 0.0, %v482
        %484 = vmatprep.mubr.f32.mxu0 0.0
        %485 = vmatmul.mubr.f32.gmra.mrb[0].mxu0 %v403
        %v486 = vpop.f32.mrb[0].mxu0
        %v487 = vadd.f32 0.0, %v486
        %v488 = vpop.f32.mrb[0].mxu0
        %v489 = vadd.f32 0.0, %v488
        %490 = vmatprep.mubr.f32.mxu0 0.0
        %491 = vmatmul.mubr.f32.gmra.mrb[0].mxu0 %v405
        %v492 = vpop.f32.mrb[0].mxu0
        %v493 = vadd.f32 0.0, %v492
        %v494 = vpop.f32.mrb[0].mxu0
        %v495 = vadd.f32 0.0, %v494
        %496 = vmatprep.mubr.f32.mxu0 0.0
        %497 = vmatmul.mubr.f32.gmra.mrb[0].mxu0 %v407
        %v498 = vpop.f32.mrb[0].mxu0
        %v499 = vadd.f32 0.0, %v498
        %v500 = vpop.f32.mrb[0].mxu0
        %v501 = vadd.f32 0.0, %v500
        %502 = vdwg.mxu0
        %v503 = vsel %vm400, %v376, 0
        %v505 = vsel %vm400, %v377, 0
        %v507 = vsel %vm400, %v378, 0
        %v509 = vsel %vm400, %v379, 0
        %v511 = vsel %vm409, %v375, 0
        %v513 = vsel %vm409, %v393, 0
        %515 = vmatprep.subr.mxu0 %v513
        %516 = vmatpush1.msra.mxu0 %v511
        %517 = vmatprep.subr.mxu0 0.0
        %518 = vmatpush1.msra.mxu0 0.0
        %519 = vmatprep.subr.mxu0 0.0
        %520 = vmatpush1.msra.mxu0 0.0
        %521 = vmatprep.subr.mxu0 0.0
        %522 = vmatpush1.msra.mxu0 0.0
        %523 = vmatprep.subr.mxu0 0.0
        %524 = vmatpush1.msra.mxu0 0.0
        %525 = vmatprep.subr.mxu0 0.0
        %526 = vmatpush1.msra.mxu0 0.0
        %527 = vmatprep.subr.mxu0 0.0
        %528 = vmatpush1.msra.mxu0 0.0
        %529 = vmatprep.subr.mxu0 0.0
        %530 = vmatpush1.msra.mxu0 0.0
        %531 = vmatprep.subr.mxu0 0.0
        %532 = vmatpush1.msra.mxu0 0.0
        %533 = vmatprep.subr.mxu0 0.0
        %534 = vmatpush1.msra.mxu0 0.0
        %535 = vmatprep.subr.mxu0 0.0
        %536 = vmatpush1.msra.mxu0 0.0
        %537 = vmatprep.subr.mxu0 0.0
        %538 = vmatpush1.msra.mxu0 0.0
        %539 = vmatprep.subr.mxu0 0.0
        %540 = vmatpush1.msra.mxu0 0.0
        %541 = vmatprep.subr.mxu0 0.0
        %542 = vmatpush1.msra.mxu0 0.0
        %543 = vmatprep.subr.mxu0 0.0
        %544 = vmatpush1.msra.mxu0 0.0
        %545 = vmatprep.subr.mxu0 0.0
        %546 = vmatpush1.msra.mxu0 0.0
        %547 = vmatprep.subr.mxu0 0.0
        %548 = vmatpush1.msra.mxu0 0.0
        %549 = vmatprep.subr.mxu0 0.0
        %550 = vmatpush1.msra.mxu0 0.0
        %551 = vmatprep.subr.mxu0 0.0
        %552 = vmatpush1.msra.mxu0 0.0
        %553 = vmatprep.subr.mxu0 0.0
        %554 = vmatpush1.msra.mxu0 0.0
        %555 = vmatprep.subr.mxu0 0.0
        %556 = vmatpush1.msra.mxu0 0.0
        %557 = vmatprep.subr.mxu0 0.0
        %558 = vmatpush1.msra.mxu0 0.0
        %559 = vmatprep.subr.mxu0 0.0
        %560 = vmatpush1.msra.mxu0 0.0
        %561 = vmatprep.subr.mxu0 0.0
        %562 = vmatpush1.msra.mxu0 0.0
        %563 = vmatprep.subr.mxu0 0.0
        %564 = vmatpush1.msra.mxu0 0.0
        %565 = vmatprep.subr.mxu0 0.0
        %566 = vmatpush1.msra.mxu0 0.0
        %567 = vmatprep.subr.mxu0 0.0
        %568 = vmatpush1.msra.mxu0 0.0
        %569 = vmatprep.subr.mxu0 0.0
        %570 = vmatpush1.msra.mxu0 0.0
        %571 = vmatprep.subr.mxu0 0.0
        %572 = vmatpush1.msra.mxu0 0.0
        %573 = vmatprep.subr.mxu0 0.0
        %574 = vmatpush1.msra.mxu0 0.0
        %575 = vmatprep.subr.mxu0 0.0
        %576 = vmatpush1.msra.mxu0 0.0
        %577 = vmatprep.subr.mxu0 0.0
        %578 = vmatpush1.msra.mxu0 0.0
        %579 = vmatprep.mubr.f32.mxu0 0.0
        %580 = vmatmul.mubr.f32.gmra.mrb[0].mxu0 %v503
        %v581 = vpop.f32.mrb[0].mxu0
        %v582 = vadd.f32 %v481, %v581
        %v583 = vpop.f32.mrb[0].mxu0
        %v584 = vadd.f32 %v483, %v583
        %585 = vmatprep.mubr.f32.mxu0 0.0
        %586 = vmatmul.mubr.f32.gmra.mrb[0].mxu0 %v505
        %v587 = vpop.f32.mrb[0].mxu0
        %v588 = vadd.f32 %v487, %v587
        %v589 = vpop.f32.mrb[0].mxu0
        %v590 = vadd.f32 %v489, %v589
        %591 = vmatprep.mubr.f32.mxu0 0.0
        %592 = vmatmul.mubr.f32.gmra.mrb[0].mxu0 %v507
        %v593 = vpop.f32.mrb[0].mxu0
        %v594 = vadd.f32 %v493, %v593
        %v595 = vpop.f32.mrb[0].mxu0
        %v596 = vadd.f32 %v495, %v595
        %597 = vmatprep.mubr.f32.mxu0 0.0
        %598 = vmatmul.mubr.f32.gmra.mrb[0].mxu0 %v509
        %v599 = vpop.f32.mrb[0].mxu0
        %v600 = vadd.f32 %v499, %v599
        %v601 = vpop.f32.mrb[0].mxu0
        %v602 = vadd.f32 %v501, %v601
        %603 = vdwg.mxu0
        %604 = vrot.lane.b32.xlu0 %v376, 120
        %v605 = vpop.permute.xlu0 %604
        %606 = vrot.lane.b32.xlu0 %v377, 120
        %v607 = vpop.permute.xlu0 %606
        %608 = vrot.lane.b32.xlu0 %v378, 120
        %v609 = vpop.permute.xlu0 %608
        %610 = vrot.lane.b32.xlu0 %v379, 120
        %v611 = vpop.permute.xlu0 %610
        %612 = vrot.lane.b32.xlu0 %v375, 126
        %v613 = vpop.permute.xlu0 %612
        %614 = vrot.lane.b32.xlu0 %v393, 126
        %v615 = vpop.permute.xlu0 %614
        %vm616 = vcmask 1031168
        %v617 = vsel %vm616, %v613, %v615
        %v618 = vsel %vm400, %v605, 0
        %v620 = vsel %vm400, %v607, 0
        %v622 = vsel %vm400, %v609, 0
        %v624 = vsel %vm400, %v611, 0
        %v626 = vsel %vm409, %v617, 0
        %v628 = vsel %vm409, %v615, 0
        %630 = vmatprep.subr.mxu0 %v628
        %631 = vmatpush1.msra.mxu0 %v626
        %632 = vmatprep.subr.mxu0 0.0
        %633 = vmatpush1.msra.mxu0 0.0
        %634 = vmatprep.subr.mxu0 0.0
        %635 = vmatpush1.msra.mxu0 0.0
        %636 = vmatprep.subr.mxu0 0.0
        %637 = vmatpush1.msra.mxu0 0.0
        %638 = vmatprep.subr.mxu0 0.0
        %639 = vmatpush1.msra.mxu0 0.0
        %640 = vmatprep.subr.mxu0 0.0
        %641 = vmatpush1.msra.mxu0 0.0
        %642 = vmatprep.subr.mxu0 0.0
        %643 = vmatpush1.msra.mxu0 0.0
        %644 = vmatprep.subr.mxu0 0.0
        %645 = vmatpush1.msra.mxu0 0.0
        %646 = vmatprep.subr.mxu0 0.0
        %647 = vmatpush1.msra.mxu0 0.0
        %648 = vmatprep.subr.mxu0 0.0
        %649 = vmatpush1.msra.mxu0 0.0
        %650 = vmatprep.subr.mxu0 0.0
        %651 = vmatpush1.msra.mxu0 0.0
        %652 = vmatprep.subr.mxu0 0.0
        %653 = vmatpush1.msra.mxu0 0.0
        %654 = vmatprep.subr.mxu0 0.0
        %655 = vmatpush1.msra.mxu0 0.0
        %656 = vmatprep.subr.mxu0 0.0
        %657 = vmatpush1.msra.mxu0 0.0
        %658 = vmatprep.subr.mxu0 0.0
        %659 = vmatpush1.msra.mxu0 0.0
        %660 = vmatprep.subr.mxu0 0.0
        %661 = vmatpush1.msra.mxu0 0.0
        %662 = vmatprep.subr.mxu0 0.0
        %663 = vmatpush1.msra.mxu0 0.0
        %664 = vmatprep.subr.mxu0 0.0
        %665 = vmatpush1.msra.mxu0 0.0
        %666 = vmatprep.subr.mxu0 0.0
        %667 = vmatpush1.msra.mxu0 0.0
        %668 = vmatprep.subr.mxu0 0.0
        %669 = vmatpush1.msra.mxu0 0.0
        %670 = vmatprep.subr.mxu0 0.0
        %671 = vmatpush1.msra.mxu0 0.0
        %672 = vmatprep.subr.mxu0 0.0
        %673 = vmatpush1.msra.mxu0 0.0
        %674 = vmatprep.subr.mxu0 0.0
        %675 = vmatpush1.msra.mxu0 0.0
        %676 = vmatprep.subr.mxu0 0.0
        %677 = vmatpush1.msra.mxu0 0.0
        %678 = vmatprep.subr.mxu0 0.0
        %679 = vmatpush1.msra.mxu0 0.0
        %680 = vmatprep.subr.mxu0 0.0
        %681 = vmatpush1.msra.mxu0 0.0
        %682 = vmatprep.subr.mxu0 0.0
        %683 = vmatpush1.msra.mxu0 0.0
        %684 = vmatprep.subr.mxu0 0.0
        %685 = vmatpush1.msra.mxu0 0.0
        %686 = vmatprep.subr.mxu0 0.0
        %687 = vmatpush1.msra.mxu0 0.0
        %688 = vmatprep.subr.mxu0 0.0
        %689 = vmatpush1.msra.mxu0 0.0
        %690 = vmatprep.subr.mxu0 0.0
        %691 = vmatpush1.msra.mxu0 0.0
        %692 = vmatprep.subr.mxu0 0.0
        %693 = vmatpush1.msra.mxu0 0.0
        %694 = vmatprep.mubr.f32.mxu0 0.0
        %695 = vmatmul.mubr.f32.gmra.mrb[0].mxu0 %v618
        %v696 = vpop.f32.mrb[0].mxu0
        %v697 = vadd.f32 0.0, %v696
        %v698 = vpop.f32.mrb[0].mxu0
        %v699 = vadd.f32 0.0, %v698
        %700 = vmatprep.mubr.f32.mxu0 0.0
        %701 = vmatmul.mubr.f32.gmra.mrb[0].mxu0 %v620
        %v702 = vpop.f32.mrb[0].mxu0
        %v703 = vadd.f32 0.0, %v702
        %v704 = vpop.f32.mrb[0].mxu0
        %v705 = vadd.f32 0.0, %v704
        %706 = vmatprep.mubr.f32.mxu0 0.0
        %707 = vmatmul.mubr.f32.gmra.mrb[0].mxu0 %v622
        %v708 = vpop.f32.mrb[0].mxu0
        %v709 = vadd.f32 0.0, %v708
        %v710 = vpop.f32.mrb[0].mxu0
        %v711 = vadd.f32 0.0, %v710
        %712 = vmatprep.mubr.f32.mxu0 0.0
        %713 = vmatmul.mubr.f32.gmra.mrb[0].mxu0 %v624
        %v714 = vpop.f32.mrb[0].mxu0
        %v715 = vadd.f32 0.0, %v714
        %v716 = vpop.f32.mrb[0].mxu0
        %v717 = vadd.f32 0.0, %v716
        %718 = vdwg.mxu0
        %v719 = vadd.f32 %v582, %v697
        %v720 = vadd.f32 %v584, %v699
        %v721 = vadd.f32 %v588, %v703
        %v722 = vadd.f32 %v590, %v705
        %v723 = vadd.f32 %v594, %v709
        %v724 = vadd.f32 %v596, %v711
        %v725 = vadd.f32 %v600, %v715
        %v726 = vadd.f32 %v602, %v717
        %v727 = vld [vmem:[%s4] sm:$0xff]
        %v728 = vld [vmem:[%s4 + $0x8] sm:$0xff]
        %v729 = vld [vmem:[%s4 + $0x10] sm:$0xff]
        %v730 = vld [vmem:[%s4 + $0x18] sm:$0xff]
        %732 = vset.pattern.permute.xlu0 0
        %733 = vperm.xlu0 %732, %v727
        %v734 = vpop.permute.xlu0 %733
        %737 = vset.pattern.permute.xlu0 0
        %738 = vperm.xlu0 %737, %v728
        %v739 = vpop.permute.xlu0 %738
        %742 = vset.pattern.permute.xlu0 0
        %743 = vperm.xlu0 %742, %v729
        %v744 = vpop.permute.xlu0 %743
        %747 = vset.pattern.permute.xlu0 0
        %748 = vperm.xlu0 %747, %v730
        %v749 = vpop.permute.xlu0 %748
        %v751 = vadd.f32 %v719, %v734
        %v752 = vadd.f32 %v720, %v734
        %v753 = vadd.f32 %v721, %v739
        %v754 = vadd.f32 %v722, %v739
        %v755 = vadd.f32 %v723, %v744
        %v756 = vadd.f32 %v724, %v744
        %v757 = vadd.f32 %v725, %v749
        %v758 = vadd.f32 %v726, %v749
        %v759 = vadd.f32 %v751, %v753
        %v760 = vadd.f32 %v759, %v755
        %v761 = vadd.f32 %v760, %v757
        %v762 = vrot.slane %v761, 4
        %v763 = vadd.f32 %v761, %v762
        %v764 = vrot.slane %v763, 2
        %v765 = vadd.f32 %v763, %v764
        %v766 = vrot.slane %v765, 1
        %v767 = vadd.f32 %v765, %v766
        %v768 = vsel %vm400, %v752, 0.0
        %v769 = vsel %vm400, %v754, 0.0
        %v770 = vadd.f32 %v768, %v769
        %v771 = vsel %vm400, %v756, 0.0
        %v772 = vadd.f32 %v770, %v771
        %v773 = vsel %vm400, %v758, 0.0
        %v774 = vadd.f32 %v772, %v773
        %v775 = vrot.slane %v774, 4
        %v776 = vadd.f32 %v774, %v775
        %v777 = vrot.slane %v776, 2
        %v778 = vadd.f32 %v776, %v777
        %v779 = vrot.slane %v778, 1
        %v780 = vadd.f32 %v778, %v779
        %v781 = vrcp.pop 32.0
        %v782 = vmul.f32 %v767, %v781
        %v783 = vmul.f32 %v780, %v781
        %v784 = vsub.f32 %v751, %v782
        %v785 = vsub.f32 %v752, %v783
        %v786 = vsub.f32 %v753, %v782
        %v787 = vsub.f32 %v754, %v783
        %v788 = vsub.f32 %v755, %v782
        %v789 = vsub.f32 %v756, %v783
        %v790 = vsub.f32 %v757, %v782
        %v791 = vsub.f32 %v758, %v783
        %v792 = vmul.f32 %v784, %v784
        %v793 = vmul.f32 %v785, %v785
        %v794 = vmul.f32 %v786, %v786
        %v795 = vmul.f32 %v787, %v787
        %v796 = vmul.f32 %v788, %v788
        %v797 = vmul.f32 %v789, %v789
        %v798 = vmul.f32 %v790, %v790
        %v799 = vmul.f32 %v791, %v791
        %v800 = vadd.f32 %v792, %v794
        %v801 = vadd.f32 %v800, %v796
        %v802 = vadd.f32 %v801, %v798
        %v803 = vrot.slane %v802, 4
        %v804 = vadd.f32 %v802, %v803
        %v805 = vrot.slane %v804, 2
        %v806 = vadd.f32 %v804, %v805
        %v807 = vrot.slane %v806, 1
        %v808 = vadd.f32 %v806, %v807
        %v809 = vsel %vm400, %v793, 0.0
        %v810 = vsel %vm400, %v795, 0.0
        %v811 = vadd.f32 %v809, %v810
        %v812 = vsel %vm400, %v797, 0.0
        %v813 = vadd.f32 %v811, %v812
        %v814 = vsel %vm400, %v799, 0.0
        %v815 = vadd.f32 %v813, %v814
        %v816 = vrot.slane %v815, 4
        %v817 = vadd.f32 %v815, %v816
        %v818 = vrot.slane %v817, 2
        %v819 = vadd.f32 %v817, %v818
        %v820 = vrot.slane %v819, 1
        %v821 = vadd.f32 %v819, %v820
        %v822 = vmul.f32 %v808, %v781
        %v823 = vmul.f32 %v821, %v781
        %v824 = vadd.f32 %v822, 1e-05
        %v825 = vadd.f32 %v823, 1e-05
        %v826 = vrsqrt.pop %v824
        %v827 = vrsqrt.pop %v825
        %v828 = vmul.f32 %v784, %v826
        %v829 = vmul.f32 %v785, %v827
        %v830 = vmul.f32 %v786, %v826
        %v831 = vmul.f32 %v787, %v827
        %v832 = vmul.f32 %v788, %v826
        %v833 = vmul.f32 %v789, %v827
        %v834 = vmul.f32 %v790, %v826
        %v835 = vmul.f32 %v791, %v827
        %v836 = vld [vmem:[%s5] sm:$0xff]
        %v837 = vld [vmem:[%s5 + $0x8] sm:$0xff]
        %v838 = vld [vmem:[%s5 + $0x10] sm:$0xff]
        %v839 = vld [vmem:[%s5 + $0x18] sm:$0xff]
        %841 = vset.pattern.permute.xlu0 0
        %842 = vperm.xlu0 %841, %v836
        %v843 = vpop.permute.xlu0 %842
        %846 = vset.pattern.permute.xlu0 0
        %847 = vperm.xlu0 %846, %v837
        %v848 = vpop.permute.xlu0 %847
        %851 = vset.pattern.permute.xlu0 0
        %852 = vperm.xlu0 %851, %v838
        %v853 = vpop.permute.xlu0 %852
        %856 = vset.pattern.permute.xlu0 0
        %857 = vperm.xlu0 %856, %v839
        %v858 = vpop.permute.xlu0 %857
        %v860 = vmul.f32 %v828, %v843
        %v861 = vmul.f32 %v829, %v843
        %v862 = vmul.f32 %v830, %v848
        %v863 = vmul.f32 %v831, %v848
        %v864 = vmul.f32 %v832, %v853
        %v865 = vmul.f32 %v833, %v853
        %v866 = vmul.f32 %v834, %v858
        %v867 = vmul.f32 %v835, %v858
        %v868 = vld [vmem:[%s6] sm:$0xff]
        %v869 = vld [vmem:[%s6 + $0x8] sm:$0xff]
        %v870 = vld [vmem:[%s6 + $0x10] sm:$0xff]
        %v871 = vld [vmem:[%s6 + $0x18] sm:$0xff]
        %873 = vset.pattern.permute.xlu0 0
        %874 = vperm.xlu0 %873, %v868
        %v875 = vpop.permute.xlu0 %874
        %878 = vset.pattern.permute.xlu0 0
        %879 = vperm.xlu0 %878, %v869
        %v880 = vpop.permute.xlu0 %879
        %883 = vset.pattern.permute.xlu0 0
        %884 = vperm.xlu0 %883, %v870
        %v885 = vpop.permute.xlu0 %884
        %888 = vset.pattern.permute.xlu0 0
        %889 = vperm.xlu0 %888, %v871
        %v890 = vpop.permute.xlu0 %889
        %v892 = vadd.f32 %v860, %v875
        %v893 = vadd.f32 %v861, %v875
        %v894 = vadd.f32 %v862, %v880
        %v895 = vadd.f32 %v863, %v880
        %v896 = vadd.f32 %v864, %v885
        %v897 = vadd.f32 %v865, %v885
        %v898 = vadd.f32 %v866, %v890
        %v899 = vadd.f32 %v867, %v890
        %v900 = vmax.f32 %v892, 0.0
        %v901 = vmax.f32 %v893, 0.0
        %v902 = vmax.f32 %v894, 0.0
        %v903 = vmax.f32 %v895, 0.0
        %v904 = vmax.f32 %v896, 0.0
        %v905 = vmax.f32 %v897, 0.0
        %v906 = vmax.f32 %v898, 0.0
        %v907 = vmax.f32 %v899, 0.0
        %908 = vrot.lane.b32.xlu0 %v368, 127
        %v909 = vpop.permute.xlu0 %908
        %910 = vrot.lane.b32.xlu0 %v372, 127
        %v911 = vpop.permute.xlu0 %910
        %v912 = vsel %vm398, %v909, %v911
        %v915 = vmul.f32 %v900, %v912
        %v916 = vmul.f32 %v901, %v911
        %v917 = vmul.f32 %v902, %v912
        %v918 = vmul.f32 %v903, %v911
        %v919 = vmul.f32 %v904, %v912
        %v920 = vmul.f32 %v905, %v911
        %v921 = vmul.f32 %v906, %v912
        %v922 = vmul.f32 %v907, %v911
        %v923 = vld [vmem:[%s3] sm:$0xff]
        %v924 = vld [vmem:[%s3 + $0x8] sm:$0xff]
        %v925 = vld [vmem:[%s3 + $0x10] sm:$0xff]
        %v926 = vld [vmem:[%s3 + $0x18] sm:$0xff]
        %935 = vrot.lane.b32.xlu0 %v915, 127
        %v936 = vpop.permute.xlu0 %935
        %937 = vrot.lane.b32.xlu0 %v916, 127
        %v938 = vpop.permute.xlu0 %937
        %939 = vrot.lane.b32.xlu0 %v917, 127
        %v940 = vpop.permute.xlu0 %939
        %941 = vrot.lane.b32.xlu0 %v918, 127
        %v942 = vpop.permute.xlu0 %941
        %943 = vrot.lane.b32.xlu0 %v919, 127
        %v944 = vpop.permute.xlu0 %943
        %945 = vrot.lane.b32.xlu0 %v920, 127
        %v946 = vpop.permute.xlu0 %945
        %947 = vrot.lane.b32.xlu0 %v921, 127
        %v948 = vpop.permute.xlu0 %947
        %949 = vrot.lane.b32.xlu0 %v922, 127
        %v950 = vpop.permute.xlu0 %949
        %v951 = vsel %vm398, %v936, %v938
        %v952 = vsel %vm398, %v940, %v942
        %v953 = vsel %vm398, %v944, %v946
        %v954 = vsel %vm398, %v948, %v950
        %963 = vrot.lane.b32.xlu0 %v915, 126
        %v964 = vpop.permute.xlu0 %963
        %965 = vrot.lane.b32.xlu0 %v916, 126
        %v966 = vpop.permute.xlu0 %965
        %967 = vrot.lane.b32.xlu0 %v917, 126
        %v968 = vpop.permute.xlu0 %967
        %969 = vrot.lane.b32.xlu0 %v918, 126
        %v970 = vpop.permute.xlu0 %969
        %971 = vrot.lane.b32.xlu0 %v919, 126
        %v972 = vpop.permute.xlu0 %971
        %973 = vrot.lane.b32.xlu0 %v920, 126
        %v974 = vpop.permute.xlu0 %973
        %975 = vrot.lane.b32.xlu0 %v921, 126
        %v976 = vpop.permute.xlu0 %975
        %977 = vrot.lane.b32.xlu0 %v922, 126
        %v978 = vpop.permute.xlu0 %977
        %v979 = vsel %vm616, %v964, %v966
        %v980 = vsel %vm616, %v968, %v970
        %v981 = vsel %vm616, %v972, %v974
        %v982 = vsel %vm616, %v976, %v978
        %s991 = scalar_lea.vmem %s4, 32
        %v992 = vld [vmem:[%s991] sm:$0xff]
        %v993 = vld [vmem:[%s991 + $0x8] sm:$0xff]
        %v994 = vld [vmem:[%s991 + $0x10] sm:$0xff]
        %v995 = vld [vmem:[%s991 + $0x18] sm:$0xff]
        %997 = vset.pattern.permute.xlu0 0
        %998 = vperm.xlu0 %997, %v992
        %v999 = vpop.permute.xlu0 %998
        %1002 = vset.pattern.permute.xlu0 0
        %1003 = vperm.xlu0 %1002, %v993
        %v1004 = vpop.permute.xlu0 %1003
        %1007 = vset.pattern.permute.xlu0 0
        %1008 = vperm.xlu0 %1007, %v994
        %v1009 = vpop.permute.xlu0 %1008
        %1012 = vset.pattern.permute.xlu0 0
        %1013 = vperm.xlu0 %1012, %v995
        %v1014 = vpop.permute.xlu0 %1013
        %vm1016 = vcmask 785408
        %v1018 = vsel %vm1016, %v923, 0
        %v1021 = vsel %vm1016, %v924, 0
        %v1024 = vsel %vm1016, %v925, 0
        %v1027 = vsel %vm1016, %v926, 0
        %1029 = vmatprep.subr.mxu0 %v916
        %1030 = vmatpush1.msra.mxu0 %v915
        %1031 = vmatprep.subr.mxu0 %v918
        %1032 = vmatpush1.msra.mxu0 %v917
        %1033 = vmatprep.subr.mxu0 %v920
        %1034 = vmatpush1.msra.mxu0 %v919
        %1035 = vmatprep.subr.mxu0 %v922
        %1036 = vmatpush1.msra.mxu0 %v921
        %1037 = vmatprep.subr.mxu0 %v938
        %1038 = vmatpush1.msra.mxu0 %v951
        %1039 = vmatprep.subr.mxu0 %v942
        %1040 = vmatpush1.msra.mxu0 %v952
        %1041 = vmatprep.subr.mxu0 %v946
        %1042 = vmatpush1.msra.mxu0 %v953
        %1043 = vmatprep.subr.mxu0 %v950
        %1044 = vmatpush1.msra.mxu0 %v954
        %1045 = vmatprep.subr.mxu0 %v966
        %1046 = vmatpush1.msra.mxu0 %v979
        %1047 = vmatprep.subr.mxu0 %v970
        %1048 = vmatpush1.msra.mxu0 %v980
        %1049 = vmatprep.subr.mxu0 %v974
        %1050 = vmatpush1.msra.mxu0 %v981
        %1051 = vmatprep.subr.mxu0 %v978
        %1052 = vmatpush1.msra.mxu0 %v982
        %1053 = vmatprep.subr.mxu0 0.0
        %1054 = vmatpush1.msra.mxu0 0.0
        %1055 = vmatprep.subr.mxu0 0.0
        %1056 = vmatpush1.msra.mxu0 0.0
        %1057 = vmatprep.subr.mxu0 0.0
        %1058 = vmatpush1.msra.mxu0 0.0
        %1059 = vmatprep.subr.mxu0 0.0
        %1060 = vmatpush1.msra.mxu0 0.0
        %1061 = vmatprep.subr.mxu0 0.0
        %1062 = vmatpush1.msra.mxu0 0.0
        %1063 = vmatprep.subr.mxu0 0.0
        %1064 = vmatpush1.msra.mxu0 0.0
        %1065 = vmatprep.subr.mxu0 0.0
        %1066 = vmatpush1.msra.mxu0 0.0
        %1067 = vmatprep.subr.mxu0 0.0
        %1068 = vmatpush1.msra.mxu0 0.0
        %1069 = vmatprep.subr.mxu0 0.0
        %1070 = vmatpush1.msra.mxu0 0.0
        %1071 = vmatprep.subr.mxu0 0.0
        %1072 = vmatpush1.msra.mxu0 0.0
        %1073 = vmatprep.subr.mxu0 0.0
        %1074 = vmatpush1.msra.mxu0 0.0
        %1075 = vmatprep.subr.mxu0 0.0
        %1076 = vmatpush1.msra.mxu0 0.0
        %1077 = vmatprep.subr.mxu0 0.0
        %1078 = vmatpush1.msra.mxu0 0.0
        %1079 = vmatprep.subr.mxu0 0.0
        %1080 = vmatpush1.msra.mxu0 0.0
        %1081 = vmatprep.subr.mxu0 0.0
        %1082 = vmatpush1.msra.mxu0 0.0
        %1083 = vmatprep.subr.mxu0 0.0
        %1084 = vmatpush1.msra.mxu0 0.0
        %1085 = vmatprep.subr.mxu0 0.0
        %1086 = vmatpush1.msra.mxu0 0.0
        %1087 = vmatprep.subr.mxu0 0.0
        %1088 = vmatpush1.msra.mxu0 0.0
        %1089 = vmatprep.subr.mxu0 0.0
        %1090 = vmatpush1.msra.mxu0 0.0
        %1091 = vmatprep.subr.mxu0 0.0
        %1092 = vmatpush1.msra.mxu0 0.0
        %1093 = vmatprep.mubr.f32.mxu0 0.0
        %1094 = vmatmul.mubr.f32.gmra.mrb[0].mxu0 %v1018
        %v1095 = vpop.f32.mrb[0].mxu0
        %v1096 = vadd.f32 %v999, %v1095
        %v1097 = vpop.f32.mrb[0].mxu0
        %v1098 = vadd.f32 %v999, %v1097
        %1099 = vmatprep.mubr.f32.mxu0 0.0
        %1100 = vmatmul.mubr.f32.gmra.mrb[0].mxu0 %v1021
        %v1101 = vpop.f32.mrb[0].mxu0
        %v1102 = vadd.f32 %v1004, %v1101
        %v1103 = vpop.f32.mrb[0].mxu0
        %v1104 = vadd.f32 %v1004, %v1103
        %1105 = vmatprep.mubr.f32.mxu0 0.0
        %1106 = vmatmul.mubr.f32.gmra.mrb[0].mxu0 %v1024
        %v1107 = vpop.f32.mrb[0].mxu0
        %v1108 = vadd.f32 %v1009, %v1107
        %v1109 = vpop.f32.mrb[0].mxu0
        %v1110 = vadd.f32 %v1009, %v1109
        %1111 = vmatprep.mubr.f32.mxu0 0.0
        %1112 = vmatmul.mubr.f32.gmra.mrb[0].mxu0 %v1027
        %v1113 = vpop.f32.mrb[0].mxu0
        %v1114 = vadd.f32 %v1014, %v1113
        %v1115 = vpop.f32.mrb[0].mxu0
        %v1116 = vadd.f32 %v1014, %v1115
        %1117 = vdwg.mxu0
        %v1118 = vadd.f32 %v1096, %v1102
        %v1119 = vadd.f32 %v1118, %v1108
        %v1120 = vadd.f32 %v1119, %v1114
        %v1121 = vrot.slane %v1120, 4
        %v1122 = vadd.f32 %v1120, %v1121
        %v1123 = vrot.slane %v1122, 2
        %v1124 = vadd.f32 %v1122, %v1123
        %v1125 = vrot.slane %v1124, 1
        %v1126 = vadd.f32 %v1124, %v1125
        %vm1127 = vcmask 15360
        %v1128 = vsel %vm1127, %v1098, 0.0
        %v1129 = vsel %vm1127, %v1104, 0.0
        %v1130 = vadd.f32 %v1128, %v1129
        %v1131 = vsel %vm1127, %v1110, 0.0
        %v1132 = vadd.f32 %v1130, %v1131
        %v1133 = vsel %vm1127, %v1116, 0.0
        %v1134 = vadd.f32 %v1132, %v1133
        %v1135 = vrot.slane %v1134, 4
        %v1136 = vadd.f32 %v1134, %v1135
        %v1137 = vrot.slane %v1136, 2
        %v1138 = vadd.f32 %v1136, %v1137
        %v1139 = vrot.slane %v1138, 1
        %v1140 = vadd.f32 %v1138, %v1139
        %v1141 = vmul.f32 %v1126, %v781
        %v1142 = vmul.f32 %v1140, %v781
        %v1143 = vsub.f32 %v1096, %v1141
        %v1144 = vsub.f32 %v1098, %v1142
        %v1145 = vsub.f32 %v1102, %v1141
        %v1146 = vsub.f32 %v1104, %v1142
        %v1147 = vsub.f32 %v1108, %v1141
        %v1148 = vsub.f32 %v1110, %v1142
        %v1149 = vsub.f32 %v1114, %v1141
        %v1150 = vsub.f32 %v1116, %v1142
        %v1151 = vmul.f32 %v1143, %v1143
        %v1152 = vmul.f32 %v1144, %v1144
        %v1153 = vmul.f32 %v1145, %v1145
        %v1154 = vmul.f32 %v1146, %v1146
        %v1155 = vmul.f32 %v1147, %v1147
        %v1156 = vmul.f32 %v1148, %v1148
        %v1157 = vmul.f32 %v1149, %v1149
        %v1158 = vmul.f32 %v1150, %v1150
        %v1159 = vadd.f32 %v1151, %v1153
        %v1160 = vadd.f32 %v1159, %v1155
        %v1161 = vadd.f32 %v1160, %v1157
        %v1162 = vrot.slane %v1161, 4
        %v1163 = vadd.f32 %v1161, %v1162
        %v1164 = vrot.slane %v1163, 2
        %v1165 = vadd.f32 %v1163, %v1164
        %v1166 = vrot.slane %v1165, 1
        %v1167 = vadd.f32 %v1165, %v1166
        %v1168 = vsel %vm1127, %v1152, 0.0
        %v1169 = vsel %vm1127, %v1154, 0.0
        %v1170 = vadd.f32 %v1168, %v1169
        %v1171 = vsel %vm1127, %v1156, 0.0
        %v1172 = vadd.f32 %v1170, %v1171
        %v1173 = vsel %vm1127, %v1158, 0.0
        %v1174 = vadd.f32 %v1172, %v1173
        %v1175 = vrot.slane %v1174, 4
        %v1176 = vadd.f32 %v1174, %v1175
        %v1177 = vrot.slane %v1176, 2
        %v1178 = vadd.f32 %v1176, %v1177
        %v1179 = vrot.slane %v1178, 1
        %v1180 = vadd.f32 %v1178, %v1179
        %v1181 = vmul.f32 %v1167, %v781
        %v1182 = vmul.f32 %v1180, %v781
        %v1183 = vadd.f32 %v1181, 1e-05
        %v1184 = vadd.f32 %v1182, 1e-05
        %v1185 = vrsqrt.pop %v1183
        %v1186 = vrsqrt.pop %v1184
        %v1187 = vmul.f32 %v1143, %v1185
        %v1188 = vmul.f32 %v1144, %v1186
        %v1189 = vmul.f32 %v1145, %v1185
        %v1190 = vmul.f32 %v1146, %v1186
        %v1191 = vmul.f32 %v1147, %v1185
        %v1192 = vmul.f32 %v1148, %v1186
        %v1193 = vmul.f32 %v1149, %v1185
        %v1194 = vmul.f32 %v1150, %v1186
        %s1195 = scalar_lea.vmem %s5, 32
        %v1196 = vld [vmem:[%s1195] sm:$0xff]
        %v1197 = vld [vmem:[%s1195 + $0x8] sm:$0xff]
        %v1198 = vld [vmem:[%s1195 + $0x10] sm:$0xff]
        %v1199 = vld [vmem:[%s1195 + $0x18] sm:$0xff]
        %1201 = vset.pattern.permute.xlu0 0
        %1202 = vperm.xlu0 %1201, %v1196
        %v1203 = vpop.permute.xlu0 %1202
        %1206 = vset.pattern.permute.xlu0 0
        %1207 = vperm.xlu0 %1206, %v1197
        %v1208 = vpop.permute.xlu0 %1207
        %1211 = vset.pattern.permute.xlu0 0
        %1212 = vperm.xlu0 %1211, %v1198
        %v1213 = vpop.permute.xlu0 %1212
        %1216 = vset.pattern.permute.xlu0 0
        %1217 = vperm.xlu0 %1216, %v1199
        %v1218 = vpop.permute.xlu0 %1217
        %v1220 = vmul.f32 %v1187, %v1203
        %v1221 = vmul.f32 %v1188, %v1203
        %v1222 = vmul.f32 %v1189, %v1208
        %v1223 = vmul.f32 %v1190, %v1208
        %v1224 = vmul.f32 %v1191, %v1213
        %v1225 = vmul.f32 %v1192, %v1213
        %v1226 = vmul.f32 %v1193, %v1218
        %v1227 = vmul.f32 %v1194, %v1218
        %s1228 = scalar_lea.vmem %s6, 32
        %v1229 = vld [vmem:[%s1228] sm:$0xff]
        %v1230 = vld [vmem:[%s1228 + $0x8] sm:$0xff]
        %v1231 = vld [vmem:[%s1228 + $0x10] sm:$0xff]
        %v1232 = vld [vmem:[%s1228 + $0x18] sm:$0xff]
        %1234 = vset.pattern.permute.xlu0 0
        %1235 = vperm.xlu0 %1234, %v1229
        %v1236 = vpop.permute.xlu0 %1235
        %1239 = vset.pattern.permute.xlu0 0
        %1240 = vperm.xlu0 %1239, %v1230
        %v1241 = vpop.permute.xlu0 %1240
        %1244 = vset.pattern.permute.xlu0 0
        %1245 = vperm.xlu0 %1244, %v1231
        %v1246 = vpop.permute.xlu0 %1245
        %1249 = vset.pattern.permute.xlu0 0
        %1250 = vperm.xlu0 %1249, %v1232
        %v1251 = vpop.permute.xlu0 %1250
        %v1253 = vadd.f32 %v1220, %v1236
        %v1254 = vadd.f32 %v1221, %v1236
        %v1255 = vadd.f32 %v1222, %v1241
        %v1256 = vadd.f32 %v1223, %v1241
        %v1257 = vadd.f32 %v1224, %v1246
        %v1258 = vadd.f32 %v1225, %v1246
        %v1259 = vadd.f32 %v1226, %v1251
        %v1260 = vadd.f32 %v1227, %v1251
        %v1261 = vmax.f32 %v1253, 0.0
        %v1262 = vmax.f32 %v1254, 0.0
        %v1263 = vmax.f32 %v1255, 0.0
        %v1264 = vmax.f32 %v1256, 0.0
        %v1265 = vmax.f32 %v1257, 0.0
        %v1266 = vmax.f32 %v1258, 0.0
        %v1267 = vmax.f32 %v1259, 0.0
        %v1268 = vmax.f32 %v1260, 0.0
        %1269 = vrot.lane.b32.xlu0 %v368, 126
        %v1270 = vpop.permute.xlu0 %1269
        %1271 = vrot.lane.b32.xlu0 %v372, 126
        %v1272 = vpop.permute.xlu0 %1271
        %v1273 = vsel %vm616, %v1270, %v1272
        %v1276 = vmul.f32 %v1261, %v1273
        %v1277 = vmul.f32 %v1262, %v1272
        %v1278 = vmul.f32 %v1263, %v1273
        %v1279 = vmul.f32 %v1264, %v1272
        %v1280 = vmul.f32 %v1265, %v1273
        %v1281 = vmul.f32 %v1266, %v1272
        %v1282 = vmul.f32 %v1267, %v1273
        %v1283 = vmul.f32 %v1268, %v1272
        %s1284 = scalar_lea.vmem %s3, 32
        %v1285 = vld [vmem:[%s1284] sm:$0xff]
        %v1286 = vld [vmem:[%s1284 + $0x8] sm:$0xff]
        %v1287 = vld [vmem:[%s1284 + $0x10] sm:$0xff]
        %v1288 = vld [vmem:[%s1284 + $0x18] sm:$0xff]
        %1297 = vrot.lane.b32.xlu0 %v1276, 127
        %v1298 = vpop.permute.xlu0 %1297
        %1299 = vrot.lane.b32.xlu0 %v1277, 127
        %v1300 = vpop.permute.xlu0 %1299
        %1301 = vrot.lane.b32.xlu0 %v1278, 127
        %v1302 = vpop.permute.xlu0 %1301
        %1303 = vrot.lane.b32.xlu0 %v1279, 127
        %v1304 = vpop.permute.xlu0 %1303
        %1305 = vrot.lane.b32.xlu0 %v1280, 127
        %v1306 = vpop.permute.xlu0 %1305
        %1307 = vrot.lane.b32.xlu0 %v1281, 127
        %v1308 = vpop.permute.xlu0 %1307
        %1309 = vrot.lane.b32.xlu0 %v1282, 127
        %v1310 = vpop.permute.xlu0 %1309
        %1311 = vrot.lane.b32.xlu0 %v1283, 127
        %v1312 = vpop.permute.xlu0 %1311
        %v1313 = vsel %vm398, %v1298, %v1300
        %v1314 = vsel %vm398, %v1302, %v1304
        %v1315 = vsel %vm398, %v1306, %v1308
        %v1316 = vsel %vm398, %v1310, %v1312
        %1321 = vrot.lane.b32.xlu0 %v1276, 126
        %v1322 = vpop.permute.xlu0 %1321
        %1323 = vrot.lane.b32.xlu0 %v1277, 126
        %v1324 = vpop.permute.xlu0 %1323
        %1325 = vrot.lane.b32.xlu0 %v1278, 126
        %v1326 = vpop.permute.xlu0 %1325
        %1327 = vrot.lane.b32.xlu0 %v1279, 126
        %v1328 = vpop.permute.xlu0 %1327
        %1329 = vrot.lane.b32.xlu0 %v1280, 126
        %v1330 = vpop.permute.xlu0 %1329
        %1331 = vrot.lane.b32.xlu0 %v1281, 126
        %v1332 = vpop.permute.xlu0 %1331
        %1333 = vrot.lane.b32.xlu0 %v1282, 126
        %v1334 = vpop.permute.xlu0 %1333
        %1335 = vrot.lane.b32.xlu0 %v1283, 126
        %v1336 = vpop.permute.xlu0 %1335
        %v1337 = vsel %vm616, %v1322, %v1324
        %v1338 = vsel %vm616, %v1326, %v1328
        %v1339 = vsel %vm616, %v1330, %v1332
        %v1340 = vsel %vm616, %v1334, %v1336
        %s1345 = scalar_lea.vmem %s4, 64
        %v1346 = vld [vmem:[%s1345] sm:$0xff]
        %v1347 = vld [vmem:[%s1345 + $0x8] sm:$0xff]
        %v1348 = vld [vmem:[%s1345 + $0x10] sm:$0xff]
        %v1349 = vld [vmem:[%s1345 + $0x18] sm:$0xff]
        %1351 = vset.pattern.permute.xlu0 0
        %1352 = vperm.xlu0 %1351, %v1346
        %v1353 = vpop.permute.xlu0 %1352
        %1356 = vset.pattern.permute.xlu0 0
        %1357 = vperm.xlu0 %1356, %v1347
        %v1358 = vpop.permute.xlu0 %1357
        %1361 = vset.pattern.permute.xlu0 0
        %1362 = vperm.xlu0 %1361, %v1348
        %v1363 = vpop.permute.xlu0 %1362
        %1366 = vset.pattern.permute.xlu0 0
        %1367 = vperm.xlu0 %1366, %v1349
        %v1368 = vpop.permute.xlu0 %1367
        %v1371 = vsel %vm1016, %v1285, 0
        %v1374 = vsel %vm1016, %v1286, 0
        %v1377 = vsel %vm1016, %v1287, 0
        %v1380 = vsel %vm1016, %v1288, 0
        %1382 = vmatprep.subr.mxu0 0.0
        %1383 = vmatpush1.msra.mxu0 %v1276
        %1384 = vmatprep.subr.mxu0 0.0
        %1385 = vmatpush1.msra.mxu0 %v1278
        %1386 = vmatprep.subr.mxu0 0.0
        %1387 = vmatpush1.msra.mxu0 %v1280
        %1388 = vmatprep.subr.mxu0 0.0
        %1389 = vmatpush1.msra.mxu0 %v1282
        %1390 = vmatprep.subr.mxu0 0.0
        %1391 = vmatpush1.msra.mxu0 %v1313
        %1392 = vmatprep.subr.mxu0 0.0
        %1393 = vmatpush1.msra.mxu0 %v1314
        %1394 = vmatprep.subr.mxu0 0.0
        %1395 = vmatpush1.msra.mxu0 %v1315
        %1396 = vmatprep.subr.mxu0 0.0
        %1397 = vmatpush1.msra.mxu0 %v1316
        %1398 = vmatprep.subr.mxu0 0.0
        %1399 = vmatpush1.msra.mxu0 %v1337
        %1400 = vmatprep.subr.mxu0 0.0
        %1401 = vmatpush1.msra.mxu0 %v1338
        %1402 = vmatprep.subr.mxu0 0.0
        %1403 = vmatpush1.msra.mxu0 %v1339
        %1404 = vmatprep.subr.mxu0 0.0
        %1405 = vmatpush1.msra.mxu0 %v1340
        %1406 = vmatprep.subr.mxu0 0.0
        %1407 = vmatpush1.msra.mxu0 0.0
        %1408 = vmatprep.subr.mxu0 0.0
        %1409 = vmatpush1.msra.mxu0 0.0
        %1410 = vmatprep.subr.mxu0 0.0
        %1411 = vmatpush1.msra.mxu0 0.0
        %1412 = vmatprep.subr.mxu0 0.0
        %1413 = vmatpush1.msra.mxu0 0.0
        %1414 = vmatprep.subr.mxu0 0.0
        %1415 = vmatpush1.msra.mxu0 0.0
        %1416 = vmatprep.subr.mxu0 0.0
        %1417 = vmatpush1.msra.mxu0 0.0
        %1418 = vmatprep.subr.mxu0 0.0
        %1419 = vmatpush1.msra.mxu0 0.0
        %1420 = vmatprep.subr.mxu0 0.0
        %1421 = vmatpush1.msra.mxu0 0.0
        %1422 = vmatprep.subr.mxu0 0.0
        %1423 = vmatpush1.msra.mxu0 0.0
        %1424 = vmatprep.subr.mxu0 0.0
        %1425 = vmatpush1.msra.mxu0 0.0
        %1426 = vmatprep.subr.mxu0 0.0
        %1427 = vmatpush1.msra.mxu0 0.0
        %1428 = vmatprep.subr.mxu0 0.0
        %1429 = vmatpush1.msra.mxu0 0.0
        %1430 = vmatprep.subr.mxu0 0.0
        %1431 = vmatpush1.msra.mxu0 0.0
        %1432 = vmatprep.subr.mxu0 0.0
        %1433 = vmatpush1.msra.mxu0 0.0
        %1434 = vmatprep.subr.mxu0 0.0
        %1435 = vmatpush1.msra.mxu0 0.0
        %1436 = vmatprep.subr.mxu0 0.0
        %1437 = vmatpush1.msra.mxu0 0.0
        %1438 = vmatprep.subr.mxu0 0.0
        %1439 = vmatpush1.msra.mxu0 0.0
        %1440 = vmatprep.subr.mxu0 0.0
        %1441 = vmatpush1.msra.mxu0 0.0
        %1442 = vmatprep.subr.mxu0 0.0
        %1443 = vmatpush1.msra.mxu0 0.0
        %1444 = vmatprep.subr.mxu0 0.0
        %1445 = vmatpush1.msra.mxu0 0.0
        %1446 = vmatprep.mubr.f32.mxu0 0.0
        %1447 = vmatmul.mubr.f32.gmra.mrb[0].mxu0 %v1371
        %v1448 = vpop.f32.mrb[0].mxu0
        %v1449 = vadd.f32 %v1353, %v1448
        %v1450 = vpop.f32.mrb[0].mxu0
        %1451 = vmatprep.mubr.f32.mxu0 0.0
        %1452 = vmatmul.mubr.f32.gmra.mrb[0].mxu0 %v1374
        %v1453 = vpop.f32.mrb[0].mxu0
        %v1454 = vadd.f32 %v1358, %v1453
        %v1455 = vpop.f32.mrb[0].mxu0
        %1456 = vmatprep.mubr.f32.mxu0 0.0
        %1457 = vmatmul.mubr.f32.gmra.mrb[0].mxu0 %v1377
        %v1458 = vpop.f32.mrb[0].mxu0
        %v1459 = vadd.f32 %v1363, %v1458
        %v1460 = vpop.f32.mrb[0].mxu0
        %1461 = vmatprep.mubr.f32.mxu0 0.0
        %1462 = vmatmul.mubr.f32.gmra.mrb[0].mxu0 %v1380
        %v1463 = vpop.f32.mrb[0].mxu0
        %v1464 = vadd.f32 %v1368, %v1463
        %v1465 = vpop.f32.mrb[0].mxu0
        %1466 = vdwg.mxu0
        %v1467 = vadd.f32 %v1449, %v1454
        %v1468 = vadd.f32 %v1467, %v1459
        %v1469 = vadd.f32 %v1468, %v1464
        %v1470 = vrot.slane %v1469, 4
        %v1471 = vadd.f32 %v1469, %v1470
        %v1472 = vrot.slane %v1471, 2
        %v1473 = vadd.f32 %v1471, %v1472
        %v1474 = vrot.slane %v1473, 1
        %v1475 = vadd.f32 %v1473, %v1474
        %v1476 = vmul.f32 %v1475, %v781
        %v1477 = vsub.f32 %v1449, %v1476
        %v1478 = vsub.f32 %v1454, %v1476
        %v1479 = vsub.f32 %v1459, %v1476
        %v1480 = vsub.f32 %v1464, %v1476
        %v1481 = vmul.f32 %v1477, %v1477
        %v1482 = vmul.f32 %v1478, %v1478
        %v1483 = vmul.f32 %v1479, %v1479
        %v1484 = vmul.f32 %v1480, %v1480
        %v1485 = vadd.f32 %v1481, %v1482
        %v1486 = vadd.f32 %v1485, %v1483
        %v1487 = vadd.f32 %v1486, %v1484
        %v1488 = vrot.slane %v1487, 4
        %v1489 = vadd.f32 %v1487, %v1488
        %v1490 = vrot.slane %v1489, 2
        %v1491 = vadd.f32 %v1489, %v1490
        %v1492 = vrot.slane %v1491, 1
        %v1493 = vadd.f32 %v1491, %v1492
        %v1494 = vmul.f32 %v1493, %v781
        %v1495 = vadd.f32 %v1494, 1e-05
        %v1496 = vrsqrt.pop %v1495
        %v1497 = vmul.f32 %v1477, %v1496
        %v1498 = vmul.f32 %v1478, %v1496
        %v1499 = vmul.f32 %v1479, %v1496
        %v1500 = vmul.f32 %v1480, %v1496
        %s1501 = scalar_lea.vmem %s5, 64
        %v1502 = vld [vmem:[%s1501] sm:$0xff]
        %v1503 = vld [vmem:[%s1501 + $0x8] sm:$0xff]
        %v1504 = vld [vmem:[%s1501 + $0x10] sm:$0xff]
        %v1505 = vld [vmem:[%s1501 + $0x18] sm:$0xff]
        %1507 = vset.pattern.permute.xlu0 0
        %1508 = vperm.xlu0 %1507, %v1502
        %v1509 = vpop.permute.xlu0 %1508
        %1512 = vset.pattern.permute.xlu0 0
        %1513 = vperm.xlu0 %1512, %v1503
        %v1514 = vpop.permute.xlu0 %1513
        %1517 = vset.pattern.permute.xlu0 0
        %1518 = vperm.xlu0 %1517, %v1504
        %v1519 = vpop.permute.xlu0 %1518
        %1522 = vset.pattern.permute.xlu0 0
        %1523 = vperm.xlu0 %1522, %v1505
        %v1524 = vpop.permute.xlu0 %1523
        %v1526 = vmul.f32 %v1497, %v1509
        %v1527 = vmul.f32 %v1498, %v1514
        %v1528 = vmul.f32 %v1499, %v1519
        %v1529 = vmul.f32 %v1500, %v1524
        %s1530 = scalar_lea.vmem %s6, 64
        %v1531 = vld [vmem:[%s1530] sm:$0xff]
        %v1532 = vld [vmem:[%s1530 + $0x8] sm:$0xff]
        %v1533 = vld [vmem:[%s1530 + $0x10] sm:$0xff]
        %v1534 = vld [vmem:[%s1530 + $0x18] sm:$0xff]
        %1536 = vset.pattern.permute.xlu0 0
        %1537 = vperm.xlu0 %1536, %v1531
        %v1538 = vpop.permute.xlu0 %1537
        %1541 = vset.pattern.permute.xlu0 0
        %1542 = vperm.xlu0 %1541, %v1532
        %v1543 = vpop.permute.xlu0 %1542
        %1546 = vset.pattern.permute.xlu0 0
        %1547 = vperm.xlu0 %1546, %v1533
        %v1548 = vpop.permute.xlu0 %1547
        %1551 = vset.pattern.permute.xlu0 0
        %1552 = vperm.xlu0 %1551, %v1534
        %v1553 = vpop.permute.xlu0 %1552
        %v1555 = vadd.f32 %v1526, %v1538
        %v1556 = vadd.f32 %v1527, %v1543
        %v1557 = vadd.f32 %v1528, %v1548
        %v1558 = vadd.f32 %v1529, %v1553
        %v1559 = vmax.f32 %v1555, 0.0
        %v1560 = vmax.f32 %v1556, 0.0
        %v1561 = vmax.f32 %v1557, 0.0
        %v1562 = vmax.f32 %v1558, 0.0
        %v1563 = vld [vmem:[%s7] sm:$0xf]
        %v1564 = vld [vmem:[%s8] sm:$0xf]
        %1566 = vset.pattern.permute.xlu0 0
        %1567 = vperm.xlu0 %1566, %v1564
        %v1568 = vpop.permute.xlu0 %1567
        %vm1570 = vcmask 261120
        %v1572 = vsel %vm1570, %v1563, 0
        %1574 = vmatprep.subr.mxu0 0.0
        %1575 = vmatpush1.msra.mxu0 %v1559
        %1576 = vmatprep.subr.mxu0 0.0
        %1577 = vmatpush1.msra.mxu0 %v1560
        %1578 = vmatprep.subr.mxu0 0.0
        %1579 = vmatpush1.msra.mxu0 %v1561
        %1580 = vmatprep.subr.mxu0 0.0
        %1581 = vmatpush1.msra.mxu0 %v1562
        %1582 = vmatprep.subr.mxu0 0.0
        %1583 = vmatpush1.msra.mxu0 0.0
        %1584 = vmatprep.subr.mxu0 0.0
        %1585 = vmatpush1.msra.mxu0 0.0
        %1586 = vmatprep.subr.mxu0 0.0
        %1587 = vmatpush1.msra.mxu0 0.0
        %1588 = vmatprep.subr.mxu0 0.0
        %1589 = vmatpush1.msra.mxu0 0.0
        %1590 = vmatprep.subr.mxu0 0.0
        %1591 = vmatpush1.msra.mxu0 0.0
        %1592 = vmatprep.subr.mxu0 0.0
        %1593 = vmatpush1.msra.mxu0 0.0
        %1594 = vmatprep.subr.mxu0 0.0
        %1595 = vmatpush1.msra.mxu0 0.0
        %1596 = vmatprep.subr.mxu0 0.0
        %1597 = vmatpush1.msra.mxu0 0.0
        %1598 = vmatprep.subr.mxu0 0.0
        %1599 = vmatpush1.msra.mxu0 0.0
        %1600 = vmatprep.subr.mxu0 0.0
        %1601 = vmatpush1.msra.mxu0 0.0
        %1602 = vmatprep.subr.mxu0 0.0
        %1603 = vmatpush1.msra.mxu0 0.0
        %1604 = vmatprep.subr.mxu0 0.0
        %1605 = vmatpush1.msra.mxu0 0.0
        %1606 = vmatprep.subr.mxu0 0.0
        %1607 = vmatpush1.msra.mxu0 0.0
        %1608 = vmatprep.subr.mxu0 0.0
        %1609 = vmatpush1.msra.mxu0 0.0
        %1610 = vmatprep.subr.mxu0 0.0
        %1611 = vmatpush1.msra.mxu0 0.0
        %1612 = vmatprep.subr.mxu0 0.0
        %1613 = vmatpush1.msra.mxu0 0.0
        %1614 = vmatprep.subr.mxu0 0.0
        %1615 = vmatpush1.msra.mxu0 0.0
        %1616 = vmatprep.subr.mxu0 0.0
        %1617 = vmatpush1.msra.mxu0 0.0
        %1618 = vmatprep.subr.mxu0 0.0
        %1619 = vmatpush1.msra.mxu0 0.0
        %1620 = vmatprep.subr.mxu0 0.0
        %1621 = vmatpush1.msra.mxu0 0.0
        %1622 = vmatprep.subr.mxu0 0.0
        %1623 = vmatpush1.msra.mxu0 0.0
        %1624 = vmatprep.subr.mxu0 0.0
        %1625 = vmatpush1.msra.mxu0 0.0
        %1626 = vmatprep.subr.mxu0 0.0
        %1627 = vmatpush1.msra.mxu0 0.0
        %1628 = vmatprep.subr.mxu0 0.0
        %1629 = vmatpush1.msra.mxu0 0.0
        %1630 = vmatprep.subr.mxu0 0.0
        %1631 = vmatpush1.msra.mxu0 0.0
        %1632 = vmatprep.subr.mxu0 0.0
        %1633 = vmatpush1.msra.mxu0 0.0
        %1634 = vmatprep.subr.mxu0 0.0
        %1635 = vmatpush1.msra.mxu0 0.0
        %1636 = vmatprep.subr.mxu0 0.0
        %1637 = vmatpush1.msra.mxu0 0.0
        %1638 = vmatprep.mubr.f32.mxu0 0.0
        %1639 = vmatmul.mubr.f32.gmra.mrb[0].mxu0 %v1572
        %v1640 = vpop.f32.mrb[0].mxu0
        %v1641 = vadd.f32 %v1568, %v1640
        %v1642 = vpop.f32.mrb[0].mxu0
        %1643 = vdwg.mxu0
        %1644 = vrot.lane.b32.xlu0 %v368, 125
        %v1645 = vpop.permute.xlu0 %1644
        %1646 = vrot.lane.b32.xlu0 %v372, 125
        %v1647 = vpop.permute.xlu0 %1646
        %vm1648 = vcmask 1022976
        %v1649 = vsel %vm1648, %v1645, %v1647
        %v1651 = vmul.f32 %v1641, %v1649
        %1653 = vrot.lane.b32.xlu0 %v1651, 3
        %v1654 = vpop.permute.xlu0 %1653
        %v1655 = vrot.slane %v1654, 4
        %vm1656 = vcmask 23552
        %v1657 = vsel %vm1656, %v1655, %v1654
        %v1659 = vadd.f32 %v375, %v1657
        %v1661 = vcombine.high %v1659, %v1659
        %1662 = vrot.lane.b32.xlu0 %v1659, 125
        %v1663 = vpop.permute.xlu0 %1662
        %1664 = vrot.lane.b32.xlu0 %v1661, 125
        %v1665 = vpop.permute.xlu0 %1664
        %v1666 = vsel %vm1648, %v1663, %v1665
        %1668 = vst [vmem:[%s352] sm:$0xf] %v1666
        %s1669 = sand.u32 %s244, 1
        %s1670 = scalar_lea.sflag [#allocation3], %s1669
        %s1671 = sand.u32 %s244, 1
        %s1672 = smul.addr %s1671, 4
        %s1673 = scalar_lea.vmem [#allocation2], %s1672
        // Predicated region
        $region57: #{conv_relu_norm_forward.1} parent=55 // pred_check
          %p1674 = pneg %p254
        $region58: #{conv_relu_norm_forward.1} parent=55 // pred_check_branch
          %1676 = sbr.rel (%p1674) target = $region60
        $region59: #{conv_relu_norm_forward.1} parent=55 // pred_region
          %s1678 = ssub.s32 64, 64
          %1679 = vsyncadd %s1670, %s1678
          %s1680 = sadd.s32 %s28, %s27
          %s1681 = smul.addr %s1680, 64
          %s1682 = scalar_lea.hbm %s9, %s1681
          %s1684 = sshll.u32 %s1673, 4
          %s1685 = int_to_ptr.vmem [resolvable:$true] %s1684
          %1687 = dma.vmem_to_hbm [thread:$0]  %s1685, 64, %s1682, %s1670
        $region60: #{conv_relu_norm_forward.1} parent=55 // pred_fallthru
          _
      $region56: #{conv_relu_norm_forward.1} parent=5 // pred_fallthru
        _
      %p1688 = scmp.le.s32.totalorder 2, %s18
      // Predicated region
      $region61: #{conv_relu_norm_forward.1} parent=5 // pred_check
        %p1689 = pneg %p1688
      $region62: #{conv_relu_norm_forward.1} parent=5 // pred_check_branch
        %1691 = sbr.rel (%p1689) target = $region64
      $region63: #{conv_relu_norm_forward.1} parent=5 // pred_region
        %s1692 = ssub.s32 %s18, 2
        // Predicated region
        $region65: #{conv_relu_norm_forward.1} parent=63 // pred_check
          %p1693 = pneg %p260
        $region66: #{conv_relu_norm_forward.1} parent=63 // pred_check_branch
          %1695 = sbr.rel (%p1693) target = $region68
        $region67: #{conv_relu_norm_forward.1} parent=63 // pred_region
          %s1696 = sand.u32 %s245, 1
          %s1697 = scalar_lea.sflag [#allocation3], %s1696
          %s1698 = sand.u32 %s245, 1
          %s1699 = smul.addr %s1698, 4
          %s1700 = scalar_lea.vmem [#allocation2], %s1699
          %1701 = dma.done %s1697, 64
        $region68: #{conv_relu_norm_forward.1} parent=63 // pred_fallthru
          _
      $region64: #{conv_relu_norm_forward.1} parent=5 // pred_fallthru
        _
    $region6: #{conv_relu_norm_forward.1} parent=1 // loop_footer
      %s22 = sadd.s32 1, %s18
    $region7: #{conv_relu_norm_forward.1} parent=1 // loop_footer_branch
      %17 = sbr.rel target = $region3
    $region8: #{conv_relu_norm_forward.1} parent=1 // loop_exit
      _
    %1702 = vsyncpa [#allocation3], 1
    %s1703 = scalar_lea.sflag [#allocation3], 1
    %1704 = vsyncpa %s1703, 1

</llo_original>
